<compile_context>
chip_gen: v5e
topology: v5e:2x2
jax: 0.10.0
libtpu: 0.0.40
codegen_flags: <defaults>
</compile_context>

<pallas_src>
import functools

import jax
import jax.numpy as jnp
from jax import lax
from jax.experimental import pallas as pl
from jax.experimental.pallas import tpu as pltpu

KSIZE = 7
PAD = (KSIZE - 1) // 2  # 3
_DX_NONZERO = (-3, -2, -1, 1, 2, 3)


def _spatial_gate_kernel(C, H, W, SUB, W_POW2, *refs):
    if W_POW2:
        w_ref, bn_ref, x_ref, o_ref, aux_scr, gate_scr = refs
        col_ref = None
    else:
        w_ref, bn_ref, col_ref, x_ref, o_ref, aux_scr, gate_scr = refs

    HW = H * W
    f32 = jnp.float32

    # ---------------- fused channel pool (max & mean), sublane-chunked ----------------
    nfull = C // SUB

    if nfull > 0:
        first = x_ref[0, 0:SUB, :].astype(f32)
        max_acc = first
        sum_acc = first
        if nfull > 1:
            if nfull <= 8:
                for i in range(1, nfull):
                    chunk = x_ref[0, i * SUB:(i + 1) * SUB, :].astype(f32)
                    max_acc = jnp.maximum(max_acc, chunk)
                    sum_acc = sum_acc + chunk
            else:
                def pool_body(i, carry):
                    ma, sa = carry
                    off = pl.multiple_of(i * SUB, SUB)
                    chunk = x_ref[0, pl.ds(off, SUB), :].astype(f32)
                    return jnp.maximum(ma, chunk), sa + chunk

                max_acc, sum_acc = lax.fori_loop(
                    1, nfull, pool_body, (max_acc, sum_acc), unroll=4)
        p_max = jnp.max(max_acc, axis=0, keepdims=True)   # cross-sublane reduce (XLU)
        p_sum = jnp.sum(sum_acc, axis=0, keepdims=True)
    else:
        row0 = x_ref[0, 0:1, :].astype(f32)
        p_max = row0
        p_sum = row0

    for r in range(max(nfull * SUB, 1), C):               # < SUB leftover rows
        row = x_ref[0, r:r + 1, :].astype(f32)
        p_max = jnp.maximum(p_max, row)
        p_sum = p_sum + row
    p_mean = p_sum * (1.0 / C)

    # ---------------- iota / boundary masks ----------------
    flat = lax.broadcasted_iota(jnp.int32, (1, HW), 1)     # flat index y*W + x
    if W_POW2:
        col = jnp.bitwise_and(flat, W - 1)                 # x coordinate, no division
    else:
        col = col_ref[...]                                 # fallback: precomputed map

    # Stash pooled maps + the 6 column-validity masks ({0,1} f32) in VMEM so the
    # conv phase keeps only a handful of (1, HW) maps live at a time.
    aux_scr[0:1, :] = p_max                                # ChannelPool order: [max, mean]
    aux_scr[1:2, :] = p_mean
    for j, dx in enumerate(_DX_NONZERO):
        valid = jnp.logical_and(col + dx >= 0, col + dx < W)
        aux_scr[2 + j:3 + j, :] = jnp.where(valid, f32(1.0), f32(0.0))

    # ---------------- 7x7 conv (2 -> 1, zero padding) via flat lane-rolls ----------------
    acc = jnp.zeros((1, HW), f32)
    for c2 in range(2):
        p = aux_scr[c2:c2 + 1, :]                          # one pooled map at a time
        for ky in range(KSIZE):
            dy = ky - PAD
            wbase = c2 * KSIZE * KSIZE + ky * KSIZE
            a = w_ref[wbase + PAD] * p                     # center tap (dx = 0)
            for kx in range(KSIZE):
                if kx == PAD:
                    continue
                dx = kx - PAD
                j = dx + PAD if dx < 0 else dx + PAD - 1   # mask row for this dx
                s = pltpu.roll(p, (-dx) % HW, axis=1)      # XLU lane rotation
                a = a + w_ref[wbase + kx] * (s * aux_scr[2 + j:3 + j, :])
            if dy != 0:
                a = pltpu.roll(a, (-dy * W) % HW, axis=1)  # row shift (flat)
                if dy > 0:
                    a = jnp.where(flat < HW - dy * W, a, f32(0.0))
                else:
                    a = jnp.where(flat >= -dy * W, a, f32(0.0))
            acc = acc + a

    # ---------------- folded eval-mode BatchNorm + sigmoid gate ----------------
    gate = jax.nn.sigmoid(acc * bn_ref[0] + bn_ref[1])     # (1, HW) f32

    # ---------------- streamed gating multiply (input dtype, SUB-row chunks) ----------------
    # One sublane broadcast of the gate, then a tight vld -> vmul -> vst stream.
    gate_scr[...] = jnp.broadcast_to(gate.astype(x_ref.dtype), gate_scr.shape)

    if nfull > 0:
        if nfull <= 8:
            for i in range(nfull):
                lo = i * SUB
                o_ref[0, lo:lo + SUB, :] = (
                    x_ref[0, lo:lo + SUB, :] * gate_scr[...]).astype(o_ref.dtype)
        else:
            def mul_body(i, carry):
                off = pl.multiple_of(i * SUB, SUB)
                o_ref[0, pl.ds(off, SUB), :] = (
                    x_ref[0, pl.ds(off, SUB), :] * gate_scr[...]).astype(o_ref.dtype)
                return carry

            lax.fori_loop(0, nfull, mul_body, 0, unroll=4)
    for r in range(nfull * SUB, C):                        # leftover rows
        o_ref[0, r:r + 1, :] = (
            x_ref[0, r:r + 1, :] * gate_scr[0:1, :]).astype(o_ref.dtype)


def spatial_gate(x, conv_w, bn_gamma, bn_beta, bn_rm, bn_rv, eps=1e-5):
    """x: (N, C, H, W); conv_w: (1, 2, 7, 7). Eval-mode BatchNorm semantics."""
    N, C, H, W = x.shape
    HW = H * W
    x_flat = x.reshape(N, C, HW)                           # lane-dense layout

    w_flat = conv_w.reshape(-1).astype(jnp.float32)        # (98,)
    bn_scale = jnp.reshape(bn_gamma, ()) / jnp.sqrt(jnp.reshape(bn_rv, ()) + eps)
    bn_bias = jnp.reshape(bn_beta, ()) - jnp.reshape(bn_rm, ()) * bn_scale
    bn_params = jnp.stack([bn_scale, bn_bias]).astype(jnp.float32)   # (2,)

    itemsize = jnp.dtype(x.dtype).itemsize
    SUB = 16 if itemsize == 2 else 8                       # sublanes per packed vreg
    w_pow2 = (W & (W - 1)) == 0

    kernel = functools.partial(_spatial_gate_kernel, C, H, W, SUB, w_pow2)

    operands = [w_flat, bn_params]
    in_specs = [
        pl.BlockSpec(memory_space=pltpu.MemorySpace.SMEM),  # conv weights (98,)
        pl.BlockSpec(memory_space=pltpu.MemorySpace.SMEM),  # folded BN (2,)
    ]
    if not w_pow2:
        # Fallback x-coordinate map for non-power-of-two W (constant block index
        # -> fetched once, not once per grid step).
        col_idx = (jnp.arange(HW, dtype=jnp.int32) % W).reshape(1, HW)
        operands.append(col_idx)
        in_specs.append(pl.BlockSpec((1, HW), lambda n: (0, 0)))
    operands.append(x_flat)
    in_specs.append(pl.BlockSpec((1, C, HW), lambda n: (n, 0, 0)))

    # Generation-aware VMEM budget: double-buffered in+out image blocks + scratch.
    block_bytes = C * HW * itemsize
    scratch_bytes = (8 * 4 + SUB * itemsize) * HW
    try:
        vmem_cap = int(pltpu.get_tpu_info().vmem_capacity_bytes)
    except Exception:
        vmem_cap = 128 << 20
    need = 4 * block_bytes + scratch_bytes + (2 << 20)
    vmem_limit = int(min(max(need, 32 << 20), int(vmem_cap * 0.9)))
    # TODO(synk): if `need` approaches vmem_cap (huge C*H*W on v7x), switch to
    #             H-tiling with a 3-row halo instead of relying on this clamp.

    cost = pl.CostEstimate(
        flops=int(N * HW * (3 * C + 4 * KSIZE * KSIZE + 4)),
        transcendentals=int(N * HW),
        bytes_accessed=int(2 * N * C * HW * itemsize),
    )

    out_flat = pl.pallas_call(
        kernel,
        out_shape=jax.ShapeDtypeStruct((N, C, HW), x.dtype),
        grid=(N,),
        in_specs=in_specs,
        out_specs=pl.BlockSpec((1, C, HW), lambda n: (n, 0, 0)),
        scratch_shapes=[
            pltpu.VMEM((8, HW), jnp.float32),              # pooled maps + column masks
            pltpu.VMEM((SUB, HW), x.dtype),                # sublane-replicated gate
        ],
        compiler_params=pltpu.CompilerParams(
            dimension_semantics=("parallel",),
            vmem_limit_bytes=vmem_limit,
        ),
        cost_estimate=cost,
    )(*operands)

    return out_flat.reshape(N, C, H, W)


def _reference(x, conv_w, bn_gamma, bn_beta, bn_rm, bn_rv, eps=1e-5):
    """Pure-JAX reference of SpatialGate.forward (eval-mode BN)."""
    ch_max = jnp.max(x, axis=1, keepdims=True)
    ch_mean = jnp.mean(x, axis=1, keepdims=True)
    pooled = jnp.concatenate([ch_max, ch_mean], axis=1)    # (N, 2, H, W)
    conv = lax.conv_general_dilated(
        pooled, conv_w, window_strides=(1, 1), padding=((PAD, PAD), (PAD, PAD)),
        dimension_numbers=("NCHW", "OIHW", "NCHW"))        # (N, 1, H, W)
    bn = (conv - bn_rm) / jnp.sqrt(bn_rv + eps) * bn_gamma + bn_beta
    return x * jax.nn.sigmoid(bn)


if __name__ == "__main__":
    key = jax.random.PRNGKey(0)
    k_x, k_w = jax.random.split(key)

    # Deterministic Conv2d(2, 1, 7, bias=False) weight (Kaiming-uniform-like bound).
    fan_in = 2 * KSIZE * KSIZE
    bound = 1.0 / (fan_in ** 0.5)
    conv_w = jax.random.uniform(k_w, (1, 2, KSIZE, KSIZE),
                                minval=-bound, maxval=bound, dtype=jnp.float32)

    # BatchNorm2d(1) defaults: weight=1, bias=0, running_mean=0, running_var=1.
    bn_gamma = jnp.float32(1.0)
    bn_beta = jnp.float32(0.0)
    bn_rm = jnp.float32(0.0)
    bn_rv = jnp.float32(1.0)

    # Primary small config + two extra configs exercising the chunked / fori /
    # non-power-of-two-W code paths (all with H*W a multiple of 128).
    configs = [
        (2, 4, 16, 16),    # C < SUB row path, power-of-two W
        (1, 20, 16, 24),   # static-chunked pooling + remainder, non-pow2 W
        (1, 80, 8, 16),    # fori_loop pooling / multiply path
    ]
    for idx, (N, C, H, W) in enumerate(configs):
        kx = jax.random.fold_in(k_x, idx)
        x = jax.random.normal(kx, (N, C, H, W), dtype=jnp.float32)

        out = spatial_gate(x, conv_w, bn_gamma, bn_beta, bn_rm, bn_rv)
        out = jax.block_until_ready(out)

        ref = _reference(x, conv_w, bn_gamma, bn_beta, bn_rm, bn_rv)
        assert out.shape == (N, C, H, W)
        assert jnp.allclose(out, ref, atol=1e-5, rtol=1e-5), (
            f"mismatch vs reference for config {(N, C, H, W)}")

    print("KERNEL_OK")
</pallas_src>

<mosaic_0001>
module attributes {stable_mosaic.version = 11 : i64} {
  func.func @_spatial_gate_kernel(%arg0: i32, %arg1: memref<98xf32, #tpu.memory_space<smem>>, %arg2: memref<2xf32, #tpu.memory_space<smem>>, %arg3: memref<1x4x256xf32, #tpu.memory_space<vmem>>, %arg4: memref<1x4x256xf32, #tpu.memory_space<vmem>>, %arg5: memref<8x256xf32, #tpu.memory_space<vmem>>, %arg6: memref<8x256xf32, #tpu.memory_space<vmem>>) attributes {dimension_semantics = [#tpu.dimension_semantics<parallel>], iteration_bounds = array<i64: 2>, scalar_prefetch = 0 : i64, scratch_operands = 2 : i64, tpu.core_type = #tpu.core_type<tc>, window_params = [{transform_indices = @transform_0, window_bounds = array<i64: 98>}, {transform_indices = @transform_1, window_bounds = array<i64: 2>}, {transform_indices = @transform_2, window_bounds = array<i64: 1, 4, 256>}, {transform_indices = @transform_3, window_bounds = array<i64: 1, 4, 256>}]} {
    %c0 = arith.constant 0 : index
    %c0_0 = arith.constant 0 : index
    %c0_1 = arith.constant 0 : index
    %0 = vector.load %arg3[%c0, %c0_0, %c0_1] : memref<1x4x256xf32, #tpu.memory_space<vmem>>, vector<1x1x256xf32>
    %1 = vector.shape_cast %0 : vector<1x1x256xf32> to vector<1x256xf32>
    %c0_2 = arith.constant 0 : index
    %c1 = arith.constant 1 : index
    %c0_3 = arith.constant 0 : index
    %2 = vector.load %arg3[%c0_2, %c1, %c0_3] : memref<1x4x256xf32, #tpu.memory_space<vmem>>, vector<1x1x256xf32>
    %3 = vector.shape_cast %2 : vector<1x1x256xf32> to vector<1x256xf32>
    %4 = arith.maximumf %1, %3 : vector<1x256xf32>
    %5 = arith.addf %1, %3 : vector<1x256xf32>
    %c0_4 = arith.constant 0 : index
    %c2 = arith.constant 2 : index
    %c0_5 = arith.constant 0 : index
    %6 = vector.load %arg3[%c0_4, %c2, %c0_5] : memref<1x4x256xf32, #tpu.memory_space<vmem>>, vector<1x1x256xf32>
    %7 = vector.shape_cast %6 : vector<1x1x256xf32> to vector<1x256xf32>
    %8 = arith.maximumf %4, %7 : vector<1x256xf32>
    %9 = arith.addf %5, %7 : vector<1x256xf32>
    %c0_6 = arith.constant 0 : index
    %c3 = arith.constant 3 : index
    %c0_7 = arith.constant 0 : index
    %10 = vector.load %arg3[%c0_6, %c3, %c0_7] : memref<1x4x256xf32, #tpu.memory_space<vmem>>, vector<1x1x256xf32>
    %11 = vector.shape_cast %10 : vector<1x1x256xf32> to vector<1x256xf32>
    %12 = arith.maximumf %8, %11 : vector<1x256xf32>
    %13 = arith.addf %9, %11 : vector<1x256xf32>
    %cst = arith.constant 2.500000e-01 : f32
    %14 = vector.broadcast %cst : f32 to vector<1x256xf32>
    %15 = arith.mulf %13, %14 : vector<1x256xf32>
    %16 = tpu.iota {dimensions = array<i32: 1>} : vector<1x256xi32>
    %c15_i32 = arith.constant 15 : i32
    %17 = vector.broadcast %c15_i32 : i32 to vector<1x256xi32>
    %18 = arith.andi %16, %17 : vector<1x256xi32>
    %c0_8 = arith.constant 0 : index
    %c0_9 = arith.constant 0 : index
    %19 = vector.load %arg5[%c0_8, %c0_9] : memref<8x256xf32, #tpu.memory_space<vmem>>, vector<1x256xf32>
    tpu.vector_store %arg5[%c0_8, %c0_9], %12 {strides = array<i32>} : memref<8x256xf32, #tpu.memory_space<vmem>>, vector<1x256xf32>,
    %c1_10 = arith.constant 1 : index
    %c0_11 = arith.constant 0 : index
    %20 = vector.load %arg5[%c1_10, %c0_11] : memref<8x256xf32, #tpu.memory_space<vmem>>, vector<1x256xf32>
    tpu.vector_store %arg5[%c1_10, %c0_11], %15 {strides = array<i32>} : memref<8x256xf32, #tpu.memory_space<vmem>>, vector<1x256xf32>,
    %c-3_i32 = arith.constant -3 : i32
    %21 = vector.broadcast %c-3_i32 : i32 to vector<1x256xi32>
    %22 = arith.addi %18, %21 : vector<1x256xi32>
    %c0_i32 = arith.constant 0 : i32
    %23 = vector.broadcast %c0_i32 : i32 to vector<1x256xi32>
    %24 = arith.cmpi sge, %22, %23 : vector<1x256xi32>
    %c-3_i32_12 = arith.constant -3 : i32
    %25 = vector.broadcast %c-3_i32_12 : i32 to vector<1x256xi32>
    %26 = arith.addi %18, %25 : vector<1x256xi32>
    %c16_i32 = arith.constant 16 : i32
    %27 = vector.broadcast %c16_i32 : i32 to vector<1x256xi32>
    %28 = arith.cmpi slt, %26, %27 : vector<1x256xi32>
    %29 = arith.andi %24, %28 : vector<1x256xi1>
    %cst_13 = arith.constant 1.000000e+00 : f32
    %cst_14 = arith.constant 0.000000e+00 : f32
    %30 = vector.broadcast %cst_13 : f32 to vector<1x256xf32>
    %31 = vector.broadcast %cst_14 : f32 to vector<1x256xf32>
    %32 = arith.select %29, %30, %31 : vector<1x256xi1>, vector<1x256xf32>
    %c2_15 = arith.constant 2 : index
    %c0_16 = arith.constant 0 : index
    %33 = vector.load %arg5[%c2_15, %c0_16] : memref<8x256xf32, #tpu.memory_space<vmem>>, vector<1x256xf32>
    tpu.vector_store %arg5[%c2_15, %c0_16], %32 {strides = array<i32>} : memref<8x256xf32, #tpu.memory_space<vmem>>, vector<1x256xf32>,
    %c-2_i32 = arith.constant -2 : i32
    %34 = vector.broadcast %c-2_i32 : i32 to vector<1x256xi32>
    %35 = arith.addi %18, %34 : vector<1x256xi32>
    %c0_i32_17 = arith.constant 0 : i32
    %36 = vector.broadcast %c0_i32_17 : i32 to vector<1x256xi32>
    %37 = arith.cmpi sge, %35, %36 : vector<1x256xi32>
    %c-2_i32_18 = arith.constant -2 : i32
    %38 = vector.broadcast %c-2_i32_18 : i32 to vector<1x256xi32>
    %39 = arith.addi %18, %38 : vector<1x256xi32>
    %c16_i32_19 = arith.constant 16 : i32
    %40 = vector.broadcast %c16_i32_19 : i32 to vector<1x256xi32>
    %41 = arith.cmpi slt, %39, %40 : vector<1x256xi32>
    %42 = arith.andi %37, %41 : vector<1x256xi1>
    %cst_20 = arith.constant 1.000000e+00 : f32
    %cst_21 = arith.constant 0.000000e+00 : f32
    %43 = vector.broadcast %cst_20 : f32 to vector<1x256xf32>
    %44 = vector.broadcast %cst_21 : f32 to vector<1x256xf32>
    %45 = arith.select %42, %43, %44 : vector<1x256xi1>, vector<1x256xf32>
    %c3_22 = arith.constant 3 : index
    %c0_23 = arith.constant 0 : index
    %46 = vector.load %arg5[%c3_22, %c0_23] : memref<8x256xf32, #tpu.memory_space<vmem>>, vector<1x256xf32>
    tpu.vector_store %arg5[%c3_22, %c0_23], %45 {strides = array<i32>} : memref<8x256xf32, #tpu.memory_space<vmem>>, vector<1x256xf32>,
    %c-1_i32 = arith.constant -1 : i32
    %47 = vector.broadcast %c-1_i32 : i32 to vector<1x256xi32>
    %48 = arith.addi %18, %47 : vector<1x256xi32>
    %c0_i32_24 = arith.constant 0 : i32
    %49 = vector.broadcast %c0_i32_24 : i32 to vector<1x256xi32>
    %50 = arith.cmpi sge, %48, %49 : vector<1x256xi32>
    %c-1_i32_25 = arith.constant -1 : i32
    %51 = vector.broadcast %c-1_i32_25 : i32 to vector<1x256xi32>
    %52 = arith.addi %18, %51 : vector<1x256xi32>
    %c16_i32_26 = arith.constant 16 : i32
    %53 = vector.broadcast %c16_i32_26 : i32 to vector<1x256xi32>
    %54 = arith.cmpi slt, %52, %53 : vector<1x256xi32>
    %55 = arith.andi %50, %54 : vector<1x256xi1>
    %cst_27 = arith.constant 1.000000e+00 : f32
    %cst_28 = arith.constant 0.000000e+00 : f32
    %56 = vector.broadcast %cst_27 : f32 to vector<1x256xf32>
    %57 = vector.broadcast %cst_28 : f32 to vector<1x256xf32>
    %58 = arith.select %55, %56, %57 : vector<1x256xi1>, vector<1x256xf32>
    %c4 = arith.constant 4 : index
    %c0_29 = arith.constant 0 : index
    %59 = vector.load %arg5[%c4, %c0_29] : memref<8x256xf32, #tpu.memory_space<vmem>>, vector<1x256xf32>
    tpu.vector_store %arg5[%c4, %c0_29], %58 {strides = array<i32>} : memref<8x256xf32, #tpu.memory_space<vmem>>, vector<1x256xf32>,
    %c1_i32 = arith.constant 1 : i32
    %60 = vector.broadcast %c1_i32 : i32 to vector<1x256xi32>
    %61 = arith.addi %18, %60 : vector<1x256xi32>
    %c0_i32_30 = arith.constant 0 : i32
    %62 = vector.broadcast %c0_i32_30 : i32 to vector<1x256xi32>
    %63 = arith.cmpi sge, %61, %62 : vector<1x256xi32>
    %c1_i32_31 = arith.constant 1 : i32
    %64 = vector.broadcast %c1_i32_31 : i32 to vector<1x256xi32>
    %65 = arith.addi %18, %64 : vector<1x256xi32>
    %c16_i32_32 = arith.constant 16 : i32
    %66 = vector.broadcast %c16_i32_32 : i32 to vector<1x256xi32>
    %67 = arith.cmpi slt, %65, %66 : vector<1x256xi32>
    %68 = arith.andi %63, %67 : vector<1x256xi1>
    %cst_33 = arith.constant 1.000000e+00 : f32
    %cst_34 = arith.constant 0.000000e+00 : f32
    %69 = vector.broadcast %cst_33 : f32 to vector<1x256xf32>
    %70 = vector.broadcast %cst_34 : f32 to vector<1x256xf32>
    %71 = arith.select %68, %69, %70 : vector<1x256xi1>, vector<1x256xf32>
    %c5 = arith.constant 5 : index
    %c0_35 = arith.constant 0 : index
    %72 = vector.load %arg5[%c5, %c0_35] : memref<8x256xf32, #tpu.memory_space<vmem>>, vector<1x256xf32>
    tpu.vector_store %arg5[%c5, %c0_35], %71 {strides = array<i32>} : memref<8x256xf32, #tpu.memory_space<vmem>>, vector<1x256xf32>,
    %c2_i32 = arith.constant 2 : i32
    %73 = vector.broadcast %c2_i32 : i32 to vector<1x256xi32>
    %74 = arith.addi %18, %73 : vector<1x256xi32>
    %c0_i32_36 = arith.constant 0 : i32
    %75 = vector.broadcast %c0_i32_36 : i32 to vector<1x256xi32>
    %76 = arith.cmpi sge, %74, %75 : vector<1x256xi32>
    %c2_i32_37 = arith.constant 2 : i32
    %77 = vector.broadcast %c2_i32_37 : i32 to vector<1x256xi32>
    %78 = arith.addi %18, %77 : vector<1x256xi32>
    %c16_i32_38 = arith.constant 16 : i32
    %79 = vector.broadcast %c16_i32_38 : i32 to vector<1x256xi32>
    %80 = arith.cmpi slt, %78, %79 : vector<1x256xi32>
    %81 = arith.andi %76, %80 : vector<1x256xi1>
    %cst_39 = arith.constant 1.000000e+00 : f32
    %cst_40 = arith.constant 0.000000e+00 : f32
    %82 = vector.broadcast %cst_39 : f32 to vector<1x256xf32>
    %83 = vector.broadcast %cst_40 : f32 to vector<1x256xf32>
    %84 = arith.select %81, %82, %83 : vector<1x256xi1>, vector<1x256xf32>
    %c6 = arith.constant 6 : index
    %c0_41 = arith.constant 0 : index
    %85 = vector.load %arg5[%c6, %c0_41] : memref<8x256xf32, #tpu.memory_space<vmem>>, vector<1x256xf32>
    tpu.vector_store %arg5[%c6, %c0_41], %84 {strides = array<i32>} : memref<8x256xf32, #tpu.memory_space<vmem>>, vector<1x256xf32>,
    %c3_i32 = arith.constant 3 : i32
    %86 = vector.broadcast %c3_i32 : i32 to vector<1x256xi32>
    %87 = arith.addi %18, %86 : vector<1x256xi32>
    %c0_i32_42 = arith.constant 0 : i32
    %88 = vector.broadcast %c0_i32_42 : i32 to vector<1x256xi32>
    %89 = arith.cmpi sge, %87, %88 : vector<1x256xi32>
    %c3_i32_43 = arith.constant 3 : i32
    %90 = vector.broadcast %c3_i32_43 : i32 to vector<1x256xi32>
    %91 = arith.addi %18, %90 : vector<1x256xi32>
    %c16_i32_44 = arith.constant 16 : i32
    %92 = vector.broadcast %c16_i32_44 : i32 to vector<1x256xi32>
    %93 = arith.cmpi slt, %91, %92 : vector<1x256xi32>
    %94 = arith.andi %89, %93 : vector<1x256xi1>
    %cst_45 = arith.constant 1.000000e+00 : f32
    %cst_46 = arith.constant 0.000000e+00 : f32
    %95 = vector.broadcast %cst_45 : f32 to vector<1x256xf32>
    %96 = vector.broadcast %cst_46 : f32 to vector<1x256xf32>
    %97 = arith.select %94, %95, %96 : vector<1x256xi1>, vector<1x256xf32>
    %c7 = arith.constant 7 : index
    %c0_47 = arith.constant 0 : index
    %98 = vector.load %arg5[%c7, %c0_47] : memref<8x256xf32, #tpu.memory_space<vmem>>, vector<1x256xf32>
    tpu.vector_store %arg5[%c7, %c0_47], %97 {strides = array<i32>} : memref<8x256xf32, #tpu.memory_space<vmem>>, vector<1x256xf32>,
    %cst_48 = arith.constant 0.000000e+00 : f32
    %99 = vector.broadcast %cst_48 : f32 to vector<1x256xf32>
    %c0_49 = arith.constant 0 : index
    %c0_50 = arith.constant 0 : index
    %100 = vector.load %arg5[%c0_49, %c0_50] : memref<8x256xf32, #tpu.memory_space<vmem>>, vector<1x256xf32>
    %c3_51 = arith.constant 3 : index
    %101 = memref.load %arg1[%c3_51] : memref<98xf32, #tpu.memory_space<smem>>
    %102 = vector.broadcast %101 : f32 to vector<1x256xf32>
    %103 = arith.mulf %102, %100 : vector<1x256xf32>
    %c3_i32_52 = arith.constant 3 : i32
    %104 = tpu.dynamic_rotate %100 by %c3_i32_52 dim 1 : vector<1x256xf32>, i32 -> vector<1x256xf32>
    %c0_53 = arith.constant 0 : index
    %105 = memref.load %arg1[%c0_53] : memref<98xf32, #tpu.memory_space<smem>>
    %c2_54 = arith.constant 2 : index
    %c0_55 = arith.constant 0 : index
    %106 = vector.load %arg5[%c2_54, %c0_55] : memref<8x256xf32, #tpu.memory_space<vmem>>, vector<1x256xf32>
    %107 = arith.mulf %104, %106 : vector<1x256xf32>
    %108 = vector.broadcast %105 : f32 to vector<1x256xf32>
    %109 = arith.mulf %108, %107 : vector<1x256xf32>
    %110 = arith.addf %103, %109 : vector<1x256xf32>
    %c2_i32_56 = arith.constant 2 : i32
    %111 = tpu.dynamic_rotate %100 by %c2_i32_56 dim 1 : vector<1x256xf32>, i32 -> vector<1x256xf32>
    %c1_57 = arith.constant 1 : index
    %112 = memref.load %arg1[%c1_57] : memref<98xf32, #tpu.memory_space<smem>>
    %c3_58 = arith.constant 3 : index
    %c0_59 = arith.constant 0 : index
    %113 = vector.load %arg5[%c3_58, %c0_59] : memref<8x256xf32, #tpu.memory_space<vmem>>, vector<1x256xf32>
    %114 = arith.mulf %111, %113 : vector<1x256xf32>
    %115 = vector.broadcast %112 : f32 to vector<1x256xf32>
    %116 = arith.mulf %115, %114 : vector<1x256xf32>
    %117 = arith.addf %110, %116 : vector<1x256xf32>
    %c1_i32_60 = arith.constant 1 : i32
    %118 = tpu.dynamic_rotate %100 by %c1_i32_60 dim 1 : vector<1x256xf32>, i32 -> vector<1x256xf32>
    %c2_61 = arith.constant 2 : index
    %119 = memref.load %arg1[%c2_61] : memref<98xf32, #tpu.memory_space<smem>>
    %c4_62 = arith.constant 4 : index
    %c0_63 = arith.constant 0 : index
    %120 = vector.load %arg5[%c4_62, %c0_63] : memref<8x256xf32, #tpu.memory_space<vmem>>, vector<1x256xf32>
    %121 = arith.mulf %118, %120 : vector<1x256xf32>
    %122 = vector.broadcast %119 : f32 to vector<1x256xf32>
    %123 = arith.mulf %122, %121 : vector<1x256xf32>
    %124 = arith.addf %117, %123 : vector<1x256xf32>
    %c255_i32 = arith.constant 255 : i32
    %125 = tpu.dynamic_rotate %100 by %c255_i32 dim 1 : vector<1x256xf32>, i32 -> vector<1x256xf32>
    %c4_64 = arith.constant 4 : index
    %126 = memref.load %arg1[%c4_64] : memref<98xf32, #tpu.memory_space<smem>>
    %c5_65 = arith.constant 5 : index
    %c0_66 = arith.constant 0 : index
    %127 = vector.load %arg5[%c5_65, %c0_66] : memref<8x256xf32, #tpu.memory_space<vmem>>, vector<1x256xf32>
    %128 = arith.mulf %125, %127 : vector<1x256xf32>
    %129 = vector.broadcast %126 : f32 to vector<1x256xf32>
    %130 = arith.mulf %129, %128 : vector<1x256xf32>
    %131 = arith.addf %124, %130 : vector<1x256xf32>
    %c254_i32 = arith.constant 254 : i32
    %132 = tpu.dynamic_rotate %100 by %c254_i32 dim 1 : vector<1x256xf32>, i32 -> vector<1x256xf32>
    %c5_67 = arith.constant 5 : index
    %133 = memref.load %arg1[%c5_67] : memref<98xf32, #tpu.memory_space<smem>>
    %c6_68 = arith.constant 6 : index
    %c0_69 = arith.constant 0 : index
    %134 = vector.load %arg5[%c6_68, %c0_69] : memref<8x256xf32, #tpu.memory_space<vmem>>, vector<1x256xf32>
    %135 = arith.mulf %132, %134 : vector<1x256xf32>
    %136 = vector.broadcast %133 : f32 to vector<1x256xf32>
    %137 = arith.mulf %136, %135 : vector<1x256xf32>
    %138 = arith.addf %131, %137 : vector<1x256xf32>
    %c253_i32 = arith.constant 253 : i32
    %139 = tpu.dynamic_rotate %100 by %c253_i32 dim 1 : vector<1x256xf32>, i32 -> vector<1x256xf32>
    %c6_70 = arith.constant 6 : index
    %140 = memref.load %arg1[%c6_70] : memref<98xf32, #tpu.memory_space<smem>>
    %c7_71 = arith.constant 7 : index
    %c0_72 = arith.constant 0 : index
    %141 = vector.load %arg5[%c7_71, %c0_72] : memref<8x256xf32, #tpu.memory_space<vmem>>, vector<1x256xf32>
    %142 = arith.mulf %139, %141 : vector<1x256xf32>
    %143 = vector.broadcast %140 : f32 to vector<1x256xf32>
    %144 = arith.mulf %143, %142 : vector<1x256xf32>
    %145 = arith.addf %138, %144 : vector<1x256xf32>
    %c48_i32 = arith.constant 48 : i32
    %146 = tpu.dynamic_rotate %145 by %c48_i32 dim 1 : vector<1x256xf32>, i32 -> vector<1x256xf32>
    %c48_i32_73 = arith.constant 48 : i32
    %147 = vector.broadcast %c48_i32_73 : i32 to vector<1x256xi32>
    %148 = arith.cmpi sge, %16, %147 : vector<1x256xi32>
    %cst_74 = arith.constant 0.000000e+00 : f32
    %149 = vector.broadcast %cst_74 : f32 to vector<1x256xf32>
    %150 = arith.select %148, %146, %149 : vector<1x256xi1>, vector<1x256xf32>
    %151 = arith.addf %99, %150 : vector<1x256xf32>
    %c10 = arith.constant 10 : index
    %152 = memref.load %arg1[%c10] : memref<98xf32, #tpu.memory_space<smem>>
    %153 = vector.broadcast %152 : f32 to vector<1x256xf32>
    %154 = arith.mulf %153, %100 : vector<1x256xf32>
    %c3_i32_75 = arith.constant 3 : i32
    %155 = tpu.dynamic_rotate %100 by %c3_i32_75 dim 1 : vector<1x256xf32>, i32 -> vector<1x256xf32>
    %c7_76 = arith.constant 7 : index
    %156 = memref.load %arg1[%c7_76] : memref<98xf32, #tpu.memory_space<smem>>
    %c2_77 = arith.constant 2 : index
    %c0_78 = arith.constant 0 : index
    %157 = vector.load %arg5[%c2_77, %c0_78] : memref<8x256xf32, #tpu.memory_space<vmem>>, vector<1x256xf32>
    %158 = arith.mulf %155, %157 : vector<1x256xf32>
    %159 = vector.broadcast %156 : f32 to vector<1x256xf32>
    %160 = arith.mulf %159, %158 : vector<1x256xf32>
    %161 = arith.addf %154, %160 : vector<1x256xf32>
    %c2_i32_79 = arith.constant 2 : i32
    %162 = tpu.dynamic_rotate %100 by %c2_i32_79 dim 1 : vector<1x256xf32>, i32 -> vector<1x256xf32>
    %c8 = arith.constant 8 : index
    %163 = memref.load %arg1[%c8] : memref<98xf32, #tpu.memory_space<smem>>
    %c3_80 = arith.constant 3 : index
    %c0_81 = arith.constant 0 : index
    %164 = vector.load %arg5[%c3_80, %c0_81] : memref<8x256xf32, #tpu.memory_space<vmem>>, vector<1x256xf32>
    %165 = arith.mulf %162, %164 : vector<1x256xf32>
    %166 = vector.broadcast %163 : f32 to vector<1x256xf32>
    %167 = arith.mulf %166, %165 : vector<1x256xf32>
    %168 = arith.addf %161, %167 : vector<1x256xf32>
    %c1_i32_82 = arith.constant 1 : i32
    %169 = tpu.dynamic_rotate %100 by %c1_i32_82 dim 1 : vector<1x256xf32>, i32 -> vector<1x256xf32>
    %c9 = arith.constant 9 : index
    %170 = memref.load %arg1[%c9] : memref<98xf32, #tpu.memory_space<smem>>
    %c4_83 = arith.constant 4 : index
    %c0_84 = arith.constant 0 : index
    %171 = vector.load %arg5[%c4_83, %c0_84] : memref<8x256xf32, #tpu.memory_space<vmem>>, vector<1x256xf32>
    %172 = arith.mulf %169, %171 : vector<1x256xf32>
    %173 = vector.broadcast %170 : f32 to vector<1x256xf32>
    %174 = arith.mulf %173, %172 : vector<1x256xf32>
    %175 = arith.addf %168, %174 : vector<1x256xf32>
    %c255_i32_85 = arith.constant 255 : i32
    %176 = tpu.dynamic_rotate %100 by %c255_i32_85 dim 1 : vector<1x256xf32>, i32 -> vector<1x256xf32>
    %c11 = arith.constant 11 : index
    %177 = memref.load %arg1[%c11] : memref<98xf32, #tpu.memory_space<smem>>
    %c5_86 = arith.constant 5 : index
    %c0_87 = arith.constant 0 : index
    %178 = vector.load %arg5[%c5_86, %c0_87] : memref<8x256xf32, #tpu.memory_space<vmem>>, vector<1x256xf32>
    %179 = arith.mulf %176, %178 : vector<1x256xf32>
    %180 = vector.broadcast %177 : f32 to vector<1x256xf32>
    %181 = arith.mulf %180, %179 : vector<1x256xf32>
    %182 = arith.addf %175, %181 : vector<1x256xf32>
    %c254_i32_88 = arith.constant 254 : i32
    %183 = tpu.dynamic_rotate %100 by %c254_i32_88 dim 1 : vector<1x256xf32>, i32 -> vector<1x256xf32>
    %c12 = arith.constant 12 : index
    %184 = memref.load %arg1[%c12] : memref<98xf32, #tpu.memory_space<smem>>
    %c6_89 = arith.constant 6 : index
    %c0_90 = arith.constant 0 : index
    %185 = vector.load %arg5[%c6_89, %c0_90] : memref<8x256xf32, #tpu.memory_space<vmem>>, vector<1x256xf32>
    %186 = arith.mulf %183, %185 : vector<1x256xf32>
    %187 = vector.broadcast %184 : f32 to vector<1x256xf32>
    %188 = arith.mulf %187, %186 : vector<1x256xf32>
    %189 = arith.addf %182, %188 : vector<1x256xf32>
    %c253_i32_91 = arith.constant 253 : i32
    %190 = tpu.dynamic_rotate %100 by %c253_i32_91 dim 1 : vector<1x256xf32>, i32 -> vector<1x256xf32>
    %c13 = arith.constant 13 : index
    %191 = memref.load %arg1[%c13] : memref<98xf32, #tpu.memory_space<smem>>
    %c7_92 = arith.constant 7 : index
    %c0_93 = arith.constant 0 : index
    %192 = vector.load %arg5[%c7_92, %c0_93] : memref<8x256xf32, #tpu.memory_space<vmem>>, vector<1x256xf32>
    %193 = arith.mulf %190, %192 : vector<1x256xf32>
    %194 = vector.broadcast %191 : f32 to vector<1x256xf32>
    %195 = arith.mulf %194, %193 : vector<1x256xf32>
    %196 = arith.addf %189, %195 : vector<1x256xf32>
    %c32_i32 = arith.constant 32 : i32
    %197 = tpu.dynamic_rotate %196 by %c32_i32 dim 1 : vector<1x256xf32>, i32 -> vector<1x256xf32>
    %c32_i32_94 = arith.constant 32 : i32
    %198 = vector.broadcast %c32_i32_94 : i32 to vector<1x256xi32>
    %199 = arith.cmpi sge, %16, %198 : vector<1x256xi32>
    %cst_95 = arith.constant 0.000000e+00 : f32
    %200 = vector.broadcast %cst_95 : f32 to vector<1x256xf32>
    %201 = arith.select %199, %197, %200 : vector<1x256xi1>, vector<1x256xf32>
    %202 = arith.addf %151, %201 : vector<1x256xf32>
    %c17 = arith.constant 17 : index
    %203 = memref.load %arg1[%c17] : memref<98xf32, #tpu.memory_space<smem>>
    %204 = vector.broadcast %203 : f32 to vector<1x256xf32>
    %205 = arith.mulf %204, %100 : vector<1x256xf32>
    %c3_i32_96 = arith.constant 3 : i32
    %206 = tpu.dynamic_rotate %100 by %c3_i32_96 dim 1 : vector<1x256xf32>, i32 -> vector<1x256xf32>
    %c14 = arith.constant 14 : index
    %207 = memref.load %arg1[%c14] : memref<98xf32, #tpu.memory_space<smem>>
    %c2_97 = arith.constant 2 : index
    %c0_98 = arith.constant 0 : index
    %208 = vector.load %arg5[%c2_97, %c0_98] : memref<8x256xf32, #tpu.memory_space<vmem>>, vector<1x256xf32>
    %209 = arith.mulf %206, %208 : vector<1x256xf32>
    %210 = vector.broadcast %207 : f32 to vector<1x256xf32>
    %211 = arith.mulf %210, %209 : vector<1x256xf32>
    %212 = arith.addf %205, %211 : vector<1x256xf32>
    %c2_i32_99 = arith.constant 2 : i32
    %213 = tpu.dynamic_rotate %100 by %c2_i32_99 dim 1 : vector<1x256xf32>, i32 -> vector<1x256xf32>
    %c15 = arith.constant 15 : index
    %214 = memref.load %arg1[%c15] : memref<98xf32, #tpu.memory_space<smem>>
    %c3_100 = arith.constant 3 : index
    %c0_101 = arith.constant 0 : index
    %215 = vector.load %arg5[%c3_100, %c0_101] : memref<8x256xf32, #tpu.memory_space<vmem>>, vector<1x256xf32>
    %216 = arith.mulf %213, %215 : vector<1x256xf32>
    %217 = vector.broadcast %214 : f32 to vector<1x256xf32>
    %218 = arith.mulf %217, %216 : vector<1x256xf32>
    %219 = arith.addf %212, %218 : vector<1x256xf32>
    %c1_i32_102 = arith.constant 1 : i32
    %220 = tpu.dynamic_rotate %100 by %c1_i32_102 dim 1 : vector<1x256xf32>, i32 -> vector<1x256xf32>
    %c16 = arith.constant 16 : index
    %221 = memref.load %arg1[%c16] : memref<98xf32, #tpu.memory_space<smem>>
    %c4_103 = arith.constant 4 : index
    %c0_104 = arith.constant 0 : index
    %222 = vector.load %arg5[%c4_103, %c0_104] : memref<8x256xf32, #tpu.memory_space<vmem>>, vector<1x256xf32>
    %223 = arith.mulf %220, %222 : vector<1x256xf32>
    %224 = vector.broadcast %221 : f32 to vector<1x256xf32>
    %225 = arith.mulf %224, %223 : vector<1x256xf32>
    %226 = arith.addf %219, %225 : vector<1x256xf32>
    %c255_i32_105 = arith.constant 255 : i32
    %227 = tpu.dynamic_rotate %100 by %c255_i32_105 dim 1 : vector<1x256xf32>, i32 -> vector<1x256xf32>
    %c18 = arith.constant 18 : index
    %228 = memref.load %arg1[%c18] : memref<98xf32, #tpu.memory_space<smem>>
    %c5_106 = arith.constant 5 : index
    %c0_107 = arith.constant 0 : index
    %229 = vector.load %arg5[%c5_106, %c0_107] : memref<8x256xf32, #tpu.memory_space<vmem>>, vector<1x256xf32>
    %230 = arith.mulf %227, %229 : vector<1x256xf32>
    %231 = vector.broadcast %228 : f32 to vector<1x256xf32>
    %232 = arith.mulf %231, %230 : vector<1x256xf32>
    %233 = arith.addf %226, %232 : vector<1x256xf32>
    %c254_i32_108 = arith.constant 254 : i32
    %234 = tpu.dynamic_rotate %100 by %c254_i32_108 dim 1 : vector<1x256xf32>, i32 -> vector<1x256xf32>
    %c19 = arith.constant 19 : index
    %235 = memref.load %arg1[%c19] : memref<98xf32, #tpu.memory_space<smem>>
    %c6_109 = arith.constant 6 : index
    %c0_110 = arith.constant 0 : index
    %236 = vector.load %arg5[%c6_109, %c0_110] : memref<8x256xf32, #tpu.memory_space<vmem>>, vector<1x256xf32>
    %237 = arith.mulf %234, %236 : vector<1x256xf32>
    %238 = vector.broadcast %235 : f32 to vector<1x256xf32>
    %239 = arith.mulf %238, %237 : vector<1x256xf32>
    %240 = arith.addf %233, %239 : vector<1x256xf32>
    %c253_i32_111 = arith.constant 253 : i32
    %241 = tpu.dynamic_rotate %100 by %c253_i32_111 dim 1 : vector<1x256xf32>, i32 -> vector<1x256xf32>
    %c20 = arith.constant 20 : index
    %242 = memref.load %arg1[%c20] : memref<98xf32, #tpu.memory_space<smem>>
    %c7_112 = arith.constant 7 : index
    %c0_113 = arith.constant 0 : index
    %243 = vector.load %arg5[%c7_112, %c0_113] : memref<8x256xf32, #tpu.memory_space<vmem>>, vector<1x256xf32>
    %244 = arith.mulf %241, %243 : vector<1x256xf32>
    %245 = vector.broadcast %242 : f32 to vector<1x256xf32>
    %246 = arith.mulf %245, %244 : vector<1x256xf32>
    %247 = arith.addf %240, %246 : vector<1x256xf32>
    %c16_i32_114 = arith.constant 16 : i32
    %248 = tpu.dynamic_rotate %247 by %c16_i32_114 dim 1 : vector<1x256xf32>, i32 -> vector<1x256xf32>
    %c16_i32_115 = arith.constant 16 : i32
    %249 = vector.broadcast %c16_i32_115 : i32 to vector<1x256xi32>
    %250 = arith.cmpi sge, %16, %249 : vector<1x256xi32>
    %cst_116 = arith.constant 0.000000e+00 : f32
    %251 = vector.broadcast %cst_116 : f32 to vector<1x256xf32>
    %252 = arith.select %250, %248, %251 : vector<1x256xi1>, vector<1x256xf32>
    %253 = arith.addf %202, %252 : vector<1x256xf32>
    %c24 = arith.constant 24 : index
    %254 = memref.load %arg1[%c24] : memref<98xf32, #tpu.memory_space<smem>>
    %255 = vector.broadcast %254 : f32 to vector<1x256xf32>
    %256 = arith.mulf %255, %100 : vector<1x256xf32>
    %c3_i32_117 = arith.constant 3 : i32
    %257 = tpu.dynamic_rotate %100 by %c3_i32_117 dim 1 : vector<1x256xf32>, i32 -> vector<1x256xf32>
    %c21 = arith.constant 21 : index
    %258 = memref.load %arg1[%c21] : memref<98xf32, #tpu.memory_space<smem>>
    %c2_118 = arith.constant 2 : index
    %c0_119 = arith.constant 0 : index
    %259 = vector.load %arg5[%c2_118, %c0_119] : memref<8x256xf32, #tpu.memory_space<vmem>>, vector<1x256xf32>
    %260 = arith.mulf %257, %259 : vector<1x256xf32>
    %261 = vector.broadcast %258 : f32 to vector<1x256xf32>
    %262 = arith.mulf %261, %260 : vector<1x256xf32>
    %263 = arith.addf %256, %262 : vector<1x256xf32>
    %c2_i32_120 = arith.constant 2 : i32
    %264 = tpu.dynamic_rotate %100 by %c2_i32_120 dim 1 : vector<1x256xf32>, i32 -> vector<1x256xf32>
    %c22 = arith.constant 22 : index
    %265 = memref.load %arg1[%c22] : memref<98xf32, #tpu.memory_space<smem>>
    %c3_121 = arith.constant 3 : index
    %c0_122 = arith.constant 0 : index
    %266 = vector.load %arg5[%c3_121, %c0_122] : memref<8x256xf32, #tpu.memory_space<vmem>>, vector<1x256xf32>
    %267 = arith.mulf %264, %266 : vector<1x256xf32>
    %268 = vector.broadcast %265 : f32 to vector<1x256xf32>
    %269 = arith.mulf %268, %267 : vector<1x256xf32>
    %270 = arith.addf %263, %269 : vector<1x256xf32>
    %c1_i32_123 = arith.constant 1 : i32
    %271 = tpu.dynamic_rotate %100 by %c1_i32_123 dim 1 : vector<1x256xf32>, i32 -> vector<1x256xf32>
    %c23 = arith.constant 23 : index
    %272 = memref.load %arg1[%c23] : memref<98xf32, #tpu.memory_space<smem>>
    %c4_124 = arith.constant 4 : index
    %c0_125 = arith.constant 0 : index
    %273 = vector.load %arg5[%c4_124, %c0_125] : memref<8x256xf32, #tpu.memory_space<vmem>>, vector<1x256xf32>
    %274 = arith.mulf %271, %273 : vector<1x256xf32>
    %275 = vector.broadcast %272 : f32 to vector<1x256xf32>
    %276 = arith.mulf %275, %274 : vector<1x256xf32>
    %277 = arith.addf %270, %276 : vector<1x256xf32>
    %c255_i32_126 = arith.constant 255 : i32
    %278 = tpu.dynamic_rotate %100 by %c255_i32_126 dim 1 : vector<1x256xf32>, i32 -> vector<1x256xf32>
    %c25 = arith.constant 25 : index
    %279 = memref.load %arg1[%c25] : memref<98xf32, #tpu.memory_space<smem>>
    %c5_127 = arith.constant 5 : index
    %c0_128 = arith.constant 0 : index
    %280 = vector.load %arg5[%c5_127, %c0_128] : memref<8x256xf32, #tpu.memory_space<vmem>>, vector<1x256xf32>
    %281 = arith.mulf %278, %280 : vector<1x256xf32>
    %282 = vector.broadcast %279 : f32 to vector<1x256xf32>
    %283 = arith.mulf %282, %281 : vector<1x256xf32>
    %284 = arith.addf %277, %283 : vector<1x256xf32>
    %c254_i32_129 = arith.constant 254 : i32
    %285 = tpu.dynamic_rotate %100 by %c254_i32_129 dim 1 : vector<1x256xf32>, i32 -> vector<1x256xf32>
    %c26 = arith.constant 26 : index
    %286 = memref.load %arg1[%c26] : memref<98xf32, #tpu.memory_space<smem>>
    %c6_130 = arith.constant 6 : index
    %c0_131 = arith.constant 0 : index
    %287 = vector.load %arg5[%c6_130, %c0_131] : memref<8x256xf32, #tpu.memory_space<vmem>>, vector<1x256xf32>
    %288 = arith.mulf %285, %287 : vector<1x256xf32>
    %289 = vector.broadcast %286 : f32 to vector<1x256xf32>
    %290 = arith.mulf %289, %288 : vector<1x256xf32>
    %291 = arith.addf %284, %290 : vector<1x256xf32>
    %c253_i32_132 = arith.constant 253 : i32
    %292 = tpu.dynamic_rotate %100 by %c253_i32_132 dim 1 : vector<1x256xf32>, i32 -> vector<1x256xf32>
    %c27 = arith.constant 27 : index
    %293 = memref.load %arg1[%c27] : memref<98xf32, #tpu.memory_space<smem>>
    %c7_133 = arith.constant 7 : index
    %c0_134 = arith.constant 0 : index
    %294 = vector.load %arg5[%c7_133, %c0_134] : memref<8x256xf32, #tpu.memory_space<vmem>>, vector<1x256xf32>
    %295 = arith.mulf %292, %294 : vector<1x256xf32>
    %296 = vector.broadcast %293 : f32 to vector<1x256xf32>
    %297 = arith.mulf %296, %295 : vector<1x256xf32>
    %298 = arith.addf %291, %297 : vector<1x256xf32>
    %299 = arith.addf %253, %298 : vector<1x256xf32>
    %c31 = arith.constant 31 : index
    %300 = memref.load %arg1[%c31] : memref<98xf32, #tpu.memory_space<smem>>
    %301 = vector.broadcast %300 : f32 to vector<1x256xf32>
    %302 = arith.mulf %301, %100 : vector<1x256xf32>
    %c3_i32_135 = arith.constant 3 : i32
    %303 = tpu.dynamic_rotate %100 by %c3_i32_135 dim 1 : vector<1x256xf32>, i32 -> vector<1x256xf32>
    %c28 = arith.constant 28 : index
    %304 = memref.load %arg1[%c28] : memref<98xf32, #tpu.memory_space<smem>>
    %c2_136 = arith.constant 2 : index
    %c0_137 = arith.constant 0 : index
    %305 = vector.load %arg5[%c2_136, %c0_137] : memref<8x256xf32, #tpu.memory_space<vmem>>, vector<1x256xf32>
    %306 = arith.mulf %303, %305 : vector<1x256xf32>
    %307 = vector.broadcast %304 : f32 to vector<1x256xf32>
    %308 = arith.mulf %307, %306 : vector<1x256xf32>
    %309 = arith.addf %302, %308 : vector<1x256xf32>
    %c2_i32_138 = arith.constant 2 : i32
    %310 = tpu.dynamic_rotate %100 by %c2_i32_138 dim 1 : vector<1x256xf32>, i32 -> vector<1x256xf32>
    %c29 = arith.constant 29 : index
    %311 = memref.load %arg1[%c29] : memref<98xf32, #tpu.memory_space<smem>>
    %c3_139 = arith.constant 3 : index
    %c0_140 = arith.constant 0 : index
    %312 = vector.load %arg5[%c3_139, %c0_140] : memref<8x256xf32, #tpu.memory_space<vmem>>, vector<1x256xf32>
    %313 = arith.mulf %310, %312 : vector<1x256xf32>
    %314 = vector.broadcast %311 : f32 to vector<1x256xf32>
    %315 = arith.mulf %314, %313 : vector<1x256xf32>
    %316 = arith.addf %309, %315 : vector<1x256xf32>
    %c1_i32_141 = arith.constant 1 : i32
    %317 = tpu.dynamic_rotate %100 by %c1_i32_141 dim 1 : vector<1x256xf32>, i32 -> vector<1x256xf32>
    %c30 = arith.constant 30 : index
    %318 = memref.load %arg1[%c30] : memref<98xf32, #tpu.memory_space<smem>>
    %c4_142 = arith.constant 4 : index
    %c0_143 = arith.constant 0 : index
    %319 = vector.load %arg5[%c4_142, %c0_143] : memref<8x256xf32, #tpu.memory_space<vmem>>, vector<1x256xf32>
    %320 = arith.mulf %317, %319 : vector<1x256xf32>
    %321 = vector.broadcast %318 : f32 to vector<1x256xf32>
    %322 = arith.mulf %321, %320 : vector<1x256xf32>
    %323 = arith.addf %316, %322 : vector<1x256xf32>
    %c255_i32_144 = arith.constant 255 : i32
    %324 = tpu.dynamic_rotate %100 by %c255_i32_144 dim 1 : vector<1x256xf32>, i32 -> vector<1x256xf32>
    %c32 = arith.constant 32 : index
    %325 = memref.load %arg1[%c32] : memref<98xf32, #tpu.memory_space<smem>>
    %c5_145 = arith.constant 5 : index
    %c0_146 = arith.constant 0 : index
    %326 = vector.load %arg5[%c5_145, %c0_146] : memref<8x256xf32, #tpu.memory_space<vmem>>, vector<1x256xf32>
    %327 = arith.mulf %324, %326 : vector<1x256xf32>
    %328 = vector.broadcast %325 : f32 to vector<1x256xf32>
    %329 = arith.mulf %328, %327 : vector<1x256xf32>
    %330 = arith.addf %323, %329 : vector<1x256xf32>
    %c254_i32_147 = arith.constant 254 : i32
    %331 = tpu.dynamic_rotate %100 by %c254_i32_147 dim 1 : vector<1x256xf32>, i32 -> vector<1x256xf32>
    %c33 = arith.constant 33 : index
    %332 = memref.load %arg1[%c33] : memref<98xf32, #tpu.memory_space<smem>>
    %c6_148 = arith.constant 6 : index
    %c0_149 = arith.constant 0 : index
    %333 = vector.load %arg5[%c6_148, %c0_149] : memref<8x256xf32, #tpu.memory_space<vmem>>, vector<1x256xf32>
    %334 = arith.mulf %331, %333 : vector<1x256xf32>
    %335 = vector.broadcast %332 : f32 to vector<1x256xf32>
    %336 = arith.mulf %335, %334 : vector<1x256xf32>
    %337 = arith.addf %330, %336 : vector<1x256xf32>
    %c253_i32_150 = arith.constant 253 : i32
    %338 = tpu.dynamic_rotate %100 by %c253_i32_150 dim 1 : vector<1x256xf32>, i32 -> vector<1x256xf32>
    %c34 = arith.constant 34 : index
    %339 = memref.load %arg1[%c34] : memref<98xf32, #tpu.memory_space<smem>>
    %c7_151 = arith.constant 7 : index
    %c0_152 = arith.constant 0 : index
    %340 = vector.load %arg5[%c7_151, %c0_152] : memref<8x256xf32, #tpu.memory_space<vmem>>, vector<1x256xf32>
    %341 = arith.mulf %338, %340 : vector<1x256xf32>
    %342 = vector.broadcast %339 : f32 to vector<1x256xf32>
    %343 = arith.mulf %342, %341 : vector<1x256xf32>
    %344 = arith.addf %337, %343 : vector<1x256xf32>
    %c240_i32 = arith.constant 240 : i32
    %345 = tpu.dynamic_rotate %344 by %c240_i32 dim 1 : vector<1x256xf32>, i32 -> vector<1x256xf32>
    %c240_i32_153 = arith.constant 240 : i32
    %346 = vector.broadcast %c240_i32_153 : i32 to vector<1x256xi32>
    %347 = arith.cmpi slt, %16, %346 : vector<1x256xi32>
    %cst_154 = arith.constant 0.000000e+00 : f32
    %348 = vector.broadcast %cst_154 : f32 to vector<1x256xf32>
    %349 = arith.select %347, %345, %348 : vector<1x256xi1>, vector<1x256xf32>
    %350 = arith.addf %299, %349 : vector<1x256xf32>
    %c38 = arith.constant 38 : index
    %351 = memref.load %arg1[%c38] : memref<98xf32, #tpu.memory_space<smem>>
    %352 = vector.broadcast %351 : f32 to vector<1x256xf32>
    %353 = arith.mulf %352, %100 : vector<1x256xf32>
    %c3_i32_155 = arith.constant 3 : i32
    %354 = tpu.dynamic_rotate %100 by %c3_i32_155 dim 1 : vector<1x256xf32>, i32 -> vector<1x256xf32>
    %c35 = arith.constant 35 : index
    %355 = memref.load %arg1[%c35] : memref<98xf32, #tpu.memory_space<smem>>
    %c2_156 = arith.constant 2 : index
    %c0_157 = arith.constant 0 : index
    %356 = vector.load %arg5[%c2_156, %c0_157] : memref<8x256xf32, #tpu.memory_space<vmem>>, vector<1x256xf32>
    %357 = arith.mulf %354, %356 : vector<1x256xf32>
    %358 = vector.broadcast %355 : f32 to vector<1x256xf32>
    %359 = arith.mulf %358, %357 : vector<1x256xf32>
    %360 = arith.addf %353, %359 : vector<1x256xf32>
    %c2_i32_158 = arith.constant 2 : i32
    %361 = tpu.dynamic_rotate %100 by %c2_i32_158 dim 1 : vector<1x256xf32>, i32 -> vector<1x256xf32>
    %c36 = arith.constant 36 : index
    %362 = memref.load %arg1[%c36] : memref<98xf32, #tpu.memory_space<smem>>
    %c3_159 = arith.constant 3 : index
    %c0_160 = arith.constant 0 : index
    %363 = vector.load %arg5[%c3_159, %c0_160] : memref<8x256xf32, #tpu.memory_space<vmem>>, vector<1x256xf32>
    %364 = arith.mulf %361, %363 : vector<1x256xf32>
    %365 = vector.broadcast %362 : f32 to vector<1x256xf32>
    %366 = arith.mulf %365, %364 : vector<1x256xf32>
    %367 = arith.addf %360, %366 : vector<1x256xf32>
    %c1_i32_161 = arith.constant 1 : i32
    %368 = tpu.dynamic_rotate %100 by %c1_i32_161 dim 1 : vector<1x256xf32>, i32 -> vector<1x256xf32>
    %c37 = arith.constant 37 : index
    %369 = memref.load %arg1[%c37] : memref<98xf32, #tpu.memory_space<smem>>
    %c4_162 = arith.constant 4 : index
    %c0_163 = arith.constant 0 : index
    %370 = vector.load %arg5[%c4_162, %c0_163] : memref<8x256xf32, #tpu.memory_space<vmem>>, vector<1x256xf32>
    %371 = arith.mulf %368, %370 : vector<1x256xf32>
    %372 = vector.broadcast %369 : f32 to vector<1x256xf32>
    %373 = arith.mulf %372, %371 : vector<1x256xf32>
    %374 = arith.addf %367, %373 : vector<1x256xf32>
    %c255_i32_164 = arith.constant 255 : i32
    %375 = tpu.dynamic_rotate %100 by %c255_i32_164 dim 1 : vector<1x256xf32>, i32 -> vector<1x256xf32>
    %c39 = arith.constant 39 : index
    %376 = memref.load %arg1[%c39] : memref<98xf32, #tpu.memory_space<smem>>
    %c5_165 = arith.constant 5 : index
    %c0_166 = arith.constant 0 : index
    %377 = vector.load %arg5[%c5_165, %c0_166] : memref<8x256xf32, #tpu.memory_space<vmem>>, vector<1x256xf32>
    %378 = arith.mulf %375, %377 : vector<1x256xf32>
    %379 = vector.broadcast %376 : f32 to vector<1x256xf32>
    %380 = arith.mulf %379, %378 : vector<1x256xf32>
    %381 = arith.addf %374, %380 : vector<1x256xf32>
    %c254_i32_167 = arith.constant 254 : i32
    %382 = tpu.dynamic_rotate %100 by %c254_i32_167 dim 1 : vector<1x256xf32>, i32 -> vector<1x256xf32>
    %c40 = arith.constant 40 : index
    %383 = memref.load %arg1[%c40] : memref<98xf32, #tpu.memory_space<smem>>
    %c6_168 = arith.constant 6 : index
    %c0_169 = arith.constant 0 : index
    %384 = vector.load %arg5[%c6_168, %c0_169] : memref<8x256xf32, #tpu.memory_space<vmem>>, vector<1x256xf32>
    %385 = arith.mulf %382, %384 : vector<1x256xf32>
    %386 = vector.broadcast %383 : f32 to vector<1x256xf32>
    %387 = arith.mulf %386, %385 : vector<1x256xf32>
    %388 = arith.addf %381, %387 : vector<1x256xf32>
    %c253_i32_170 = arith.constant 253 : i32
    %389 = tpu.dynamic_rotate %100 by %c253_i32_170 dim 1 : vector<1x256xf32>, i32 -> vector<1x256xf32>
    %c41 = arith.constant 41 : index
    %390 = memref.load %arg1[%c41] : memref<98xf32, #tpu.memory_space<smem>>
    %c7_171 = arith.constant 7 : index
    %c0_172 = arith.constant 0 : index
    %391 = vector.load %arg5[%c7_171, %c0_172] : memref<8x256xf32, #tpu.memory_space<vmem>>, vector<1x256xf32>
    %392 = arith.mulf %389, %391 : vector<1x256xf32>
    %393 = vector.broadcast %390 : f32 to vector<1x256xf32>
    %394 = arith.mulf %393, %392 : vector<1x256xf32>
    %395 = arith.addf %388, %394 : vector<1x256xf32>
    %c224_i32 = arith.constant 224 : i32
    %396 = tpu.dynamic_rotate %395 by %c224_i32 dim 1 : vector<1x256xf32>, i32 -> vector<1x256xf32>
    %c224_i32_173 = arith.constant 224 : i32
    %397 = vector.broadcast %c224_i32_173 : i32 to vector<1x256xi32>
    %398 = arith.cmpi slt, %16, %397 : vector<1x256xi32>
    %cst_174 = arith.constant 0.000000e+00 : f32
    %399 = vector.broadcast %cst_174 : f32 to vector<1x256xf32>
    %400 = arith.select %398, %396, %399 : vector<1x256xi1>, vector<1x256xf32>
    %401 = arith.addf %350, %400 : vector<1x256xf32>
    %c45 = arith.constant 45 : index
    %402 = memref.load %arg1[%c45] : memref<98xf32, #tpu.memory_space<smem>>
    %403 = vector.broadcast %402 : f32 to vector<1x256xf32>
    %404 = arith.mulf %403, %100 : vector<1x256xf32>
    %c3_i32_175 = arith.constant 3 : i32
    %405 = tpu.dynamic_rotate %100 by %c3_i32_175 dim 1 : vector<1x256xf32>, i32 -> vector<1x256xf32>
    %c42 = arith.constant 42 : index
    %406 = memref.load %arg1[%c42] : memref<98xf32, #tpu.memory_space<smem>>
    %c2_176 = arith.constant 2 : index
    %c0_177 = arith.constant 0 : index
    %407 = vector.load %arg5[%c2_176, %c0_177] : memref<8x256xf32, #tpu.memory_space<vmem>>, vector<1x256xf32>
    %408 = arith.mulf %405, %407 : vector<1x256xf32>
    %409 = vector.broadcast %406 : f32 to vector<1x256xf32>
    %410 = arith.mulf %409, %408 : vector<1x256xf32>
    %411 = arith.addf %404, %410 : vector<1x256xf32>
    %c2_i32_178 = arith.constant 2 : i32
    %412 = tpu.dynamic_rotate %100 by %c2_i32_178 dim 1 : vector<1x256xf32>, i32 -> vector<1x256xf32>
    %c43 = arith.constant 43 : index
    %413 = memref.load %arg1[%c43] : memref<98xf32, #tpu.memory_space<smem>>
    %c3_179 = arith.constant 3 : index
    %c0_180 = arith.constant 0 : index
    %414 = vector.load %arg5[%c3_179, %c0_180] : memref<8x256xf32, #tpu.memory_space<vmem>>, vector<1x256xf32>
    %415 = arith.mulf %412, %414 : vector<1x256xf32>
    %416 = vector.broadcast %413 : f32 to vector<1x256xf32>
    %417 = arith.mulf %416, %415 : vector<1x256xf32>
    %418 = arith.addf %411, %417 : vector<1x256xf32>
    %c1_i32_181 = arith.constant 1 : i32
    %419 = tpu.dynamic_rotate %100 by %c1_i32_181 dim 1 : vector<1x256xf32>, i32 -> vector<1x256xf32>
    %c44 = arith.constant 44 : index
    %420 = memref.load %arg1[%c44] : memref<98xf32, #tpu.memory_space<smem>>
    %c4_182 = arith.constant 4 : index
    %c0_183 = arith.constant 0 : index
    %421 = vector.load %arg5[%c4_182, %c0_183] : memref<8x256xf32, #tpu.memory_space<vmem>>, vector<1x256xf32>
    %422 = arith.mulf %419, %421 : vector<1x256xf32>
    %423 = vector.broadcast %420 : f32 to vector<1x256xf32>
    %424 = arith.mulf %423, %422 : vector<1x256xf32>
    %425 = arith.addf %418, %424 : vector<1x256xf32>
    %c255_i32_184 = arith.constant 255 : i32
    %426 = tpu.dynamic_rotate %100 by %c255_i32_184 dim 1 : vector<1x256xf32>, i32 -> vector<1x256xf32>
    %c46 = arith.constant 46 : index
    %427 = memref.load %arg1[%c46] : memref<98xf32, #tpu.memory_space<smem>>
    %c5_185 = arith.constant 5 : index
    %c0_186 = arith.constant 0 : index
    %428 = vector.load %arg5[%c5_185, %c0_186] : memref<8x256xf32, #tpu.memory_space<vmem>>, vector<1x256xf32>
    %429 = arith.mulf %426, %428 : vector<1x256xf32>
    %430 = vector.broadcast %427 : f32 to vector<1x256xf32>
    %431 = arith.mulf %430, %429 : vector<1x256xf32>
    %432 = arith.addf %425, %431 : vector<1x256xf32>
    %c254_i32_187 = arith.constant 254 : i32
    %433 = tpu.dynamic_rotate %100 by %c254_i32_187 dim 1 : vector<1x256xf32>, i32 -> vector<1x256xf32>
    %c47 = arith.constant 47 : index
    %434 = memref.load %arg1[%c47] : memref<98xf32, #tpu.memory_space<smem>>
    %c6_188 = arith.constant 6 : index
    %c0_189 = arith.constant 0 : index
    %435 = vector.load %arg5[%c6_188, %c0_189] : memref<8x256xf32, #tpu.memory_space<vmem>>, vector<1x256xf32>
    %436 = arith.mulf %433, %435 : vector<1x256xf32>
    %437 = vector.broadcast %434 : f32 to vector<1x256xf32>
    %438 = arith.mulf %437, %436 : vector<1x256xf32>
    %439 = arith.addf %432, %438 : vector<1x256xf32>
    %c253_i32_190 = arith.constant 253 : i32
    %440 = tpu.dynamic_rotate %100 by %c253_i32_190 dim 1 : vector<1x256xf32>, i32 -> vector<1x256xf32>
    %c48 = arith.constant 48 : index
    %441 = memref.load %arg1[%c48] : memref<98xf32, #tpu.memory_space<smem>>
    %c7_191 = arith.constant 7 : index
    %c0_192 = arith.constant 0 : index
    %442 = vector.load %arg5[%c7_191, %c0_192] : memref<8x256xf32, #tpu.memory_space<vmem>>, vector<1x256xf32>
    %443 = arith.mulf %440, %442 : vector<1x256xf32>
    %444 = vector.broadcast %441 : f32 to vector<1x256xf32>
    %445 = arith.mulf %444, %443 : vector<1x256xf32>
    %446 = arith.addf %439, %445 : vector<1x256xf32>
    %c208_i32 = arith.constant 208 : i32
    %447 = tpu.dynamic_rotate %446 by %c208_i32 dim 1 : vector<1x256xf32>, i32 -> vector<1x256xf32>
    %c208_i32_193 = arith.constant 208 : i32
    %448 = vector.broadcast %c208_i32_193 : i32 to vector<1x256xi32>
    %449 = arith.cmpi slt, %16, %448 : vector<1x256xi32>
    %cst_194 = arith.constant 0.000000e+00 : f32
    %450 = vector.broadcast %cst_194 : f32 to vector<1x256xf32>
    %451 = arith.select %449, %447, %450 : vector<1x256xi1>, vector<1x256xf32>
    %452 = arith.addf %401, %451 : vector<1x256xf32>
    %c1_195 = arith.constant 1 : index
    %c0_196 = arith.constant 0 : index
    %453 = vector.load %arg5[%c1_195, %c0_196] : memref<8x256xf32, #tpu.memory_space<vmem>>, vector<1x256xf32>
    %c52 = arith.constant 52 : index
    %454 = memref.load %arg1[%c52] : memref<98xf32, #tpu.memory_space<smem>>
    %455 = vector.broadcast %454 : f32 to vector<1x256xf32>
    %456 = arith.mulf %455, %453 : vector<1x256xf32>
    %c3_i32_197 = arith.constant 3 : i32
    %457 = tpu.dynamic_rotate %453 by %c3_i32_197 dim 1 : vector<1x256xf32>, i32 -> vector<1x256xf32>
    %c49 = arith.constant 49 : index
    %458 = memref.load %arg1[%c49] : memref<98xf32, #tpu.memory_space<smem>>
    %c2_198 = arith.constant 2 : index
    %c0_199 = arith.constant 0 : index
    %459 = vector.load %arg5[%c2_198, %c0_199] : memref<8x256xf32, #tpu.memory_space<vmem>>, vector<1x256xf32>
    %460 = arith.mulf %457, %459 : vector<1x256xf32>
    %461 = vector.broadcast %458 : f32 to vector<1x256xf32>
    %462 = arith.mulf %461, %460 : vector<1x256xf32>
    %463 = arith.addf %456, %462 : vector<1x256xf32>
    %c2_i32_200 = arith.constant 2 : i32
    %464 = tpu.dynamic_rotate %453 by %c2_i32_200 dim 1 : vector<1x256xf32>, i32 -> vector<1x256xf32>
    %c50 = arith.constant 50 : index
    %465 = memref.load %arg1[%c50] : memref<98xf32, #tpu.memory_space<smem>>
    %c3_201 = arith.constant 3 : index
    %c0_202 = arith.constant 0 : index
    %466 = vector.load %arg5[%c3_201, %c0_202] : memref<8x256xf32, #tpu.memory_space<vmem>>, vector<1x256xf32>
    %467 = arith.mulf %464, %466 : vector<1x256xf32>
    %468 = vector.broadcast %465 : f32 to vector<1x256xf32>
    %469 = arith.mulf %468, %467 : vector<1x256xf32>
    %470 = arith.addf %463, %469 : vector<1x256xf32>
    %c1_i32_203 = arith.constant 1 : i32
    %471 = tpu.dynamic_rotate %453 by %c1_i32_203 dim 1 : vector<1x256xf32>, i32 -> vector<1x256xf32>
    %c51 = arith.constant 51 : index
    %472 = memref.load %arg1[%c51] : memref<98xf32, #tpu.memory_space<smem>>
    %c4_204 = arith.constant 4 : index
    %c0_205 = arith.constant 0 : index
    %473 = vector.load %arg5[%c4_204, %c0_205] : memref<8x256xf32, #tpu.memory_space<vmem>>, vector<1x256xf32>
    %474 = arith.mulf %471, %473 : vector<1x256xf32>
    %475 = vector.broadcast %472 : f32 to vector<1x256xf32>
    %476 = arith.mulf %475, %474 : vector<1x256xf32>
    %477 = arith.addf %470, %476 : vector<1x256xf32>
    %c255_i32_206 = arith.constant 255 : i32
    %478 = tpu.dynamic_rotate %453 by %c255_i32_206 dim 1 : vector<1x256xf32>, i32 -> vector<1x256xf32>
    %c53 = arith.constant 53 : index
    %479 = memref.load %arg1[%c53] : memref<98xf32, #tpu.memory_space<smem>>
    %c5_207 = arith.constant 5 : index
    %c0_208 = arith.constant 0 : index
    %480 = vector.load %arg5[%c5_207, %c0_208] : memref<8x256xf32, #tpu.memory_space<vmem>>, vector<1x256xf32>
    %481 = arith.mulf %478, %480 : vector<1x256xf32>
    %482 = vector.broadcast %479 : f32 to vector<1x256xf32>
    %483 = arith.mulf %482, %481 : vector<1x256xf32>
    %484 = arith.addf %477, %483 : vector<1x256xf32>
    %c254_i32_209 = arith.constant 254 : i32
    %485 = tpu.dynamic_rotate %453 by %c254_i32_209 dim 1 : vector<1x256xf32>, i32 -> vector<1x256xf32>
    %c54 = arith.constant 54 : index
    %486 = memref.load %arg1[%c54] : memref<98xf32, #tpu.memory_space<smem>>
    %c6_210 = arith.constant 6 : index
    %c0_211 = arith.constant 0 : index
    %487 = vector.load %arg5[%c6_210, %c0_211] : memref<8x256xf32, #tpu.memory_space<vmem>>, vector<1x256xf32>
    %488 = arith.mulf %485, %487 : vector<1x256xf32>
    %489 = vector.broadcast %486 : f32 to vector<1x256xf32>
    %490 = arith.mulf %489, %488 : vector<1x256xf32>
    %491 = arith.addf %484, %490 : vector<1x256xf32>
    %c253_i32_212 = arith.constant 253 : i32
    %492 = tpu.dynamic_rotate %453 by %c253_i32_212 dim 1 : vector<1x256xf32>, i32 -> vector<1x256xf32>
    %c55 = arith.constant 55 : index
    %493 = memref.load %arg1[%c55] : memref<98xf32, #tpu.memory_space<smem>>
    %c7_213 = arith.constant 7 : index
    %c0_214 = arith.constant 0 : index
    %494 = vector.load %arg5[%c7_213, %c0_214] : memref<8x256xf32, #tpu.memory_space<vmem>>, vector<1x256xf32>
    %495 = arith.mulf %492, %494 : vector<1x256xf32>
    %496 = vector.broadcast %493 : f32 to vector<1x256xf32>
    %497 = arith.mulf %496, %495 : vector<1x256xf32>
    %498 = arith.addf %491, %497 : vector<1x256xf32>
    %c48_i32_215 = arith.constant 48 : i32
    %499 = tpu.dynamic_rotate %498 by %c48_i32_215 dim 1 : vector<1x256xf32>, i32 -> vector<1x256xf32>
    %c48_i32_216 = arith.constant 48 : i32
    %500 = vector.broadcast %c48_i32_216 : i32 to vector<1x256xi32>
    %501 = arith.cmpi sge, %16, %500 : vector<1x256xi32>
    %cst_217 = arith.constant 0.000000e+00 : f32
    %502 = vector.broadcast %cst_217 : f32 to vector<1x256xf32>
    %503 = arith.select %501, %499, %502 : vector<1x256xi1>, vector<1x256xf32>
    %504 = arith.addf %452, %503 : vector<1x256xf32>
    %c59 = arith.constant 59 : index
    %505 = memref.load %arg1[%c59] : memref<98xf32, #tpu.memory_space<smem>>
    %506 = vector.broadcast %505 : f32 to vector<1x256xf32>
    %507 = arith.mulf %506, %453 : vector<1x256xf32>
    %c3_i32_218 = arith.constant 3 : i32
    %508 = tpu.dynamic_rotate %453 by %c3_i32_218 dim 1 : vector<1x256xf32>, i32 -> vector<1x256xf32>
    %c56 = arith.constant 56 : index
    %509 = memref.load %arg1[%c56] : memref<98xf32, #tpu.memory_space<smem>>
    %c2_219 = arith.constant 2 : index
    %c0_220 = arith.constant 0 : index
    %510 = vector.load %arg5[%c2_219, %c0_220] : memref<8x256xf32, #tpu.memory_space<vmem>>, vector<1x256xf32>
    %511 = arith.mulf %508, %510 : vector<1x256xf32>
    %512 = vector.broadcast %509 : f32 to vector<1x256xf32>
    %513 = arith.mulf %512, %511 : vector<1x256xf32>
    %514 = arith.addf %507, %513 : vector<1x256xf32>
    %c2_i32_221 = arith.constant 2 : i32
    %515 = tpu.dynamic_rotate %453 by %c2_i32_221 dim 1 : vector<1x256xf32>, i32 -> vector<1x256xf32>
    %c57 = arith.constant 57 : index
    %516 = memref.load %arg1[%c57] : memref<98xf32, #tpu.memory_space<smem>>
    %c3_222 = arith.constant 3 : index
    %c0_223 = arith.constant 0 : index
    %517 = vector.load %arg5[%c3_222, %c0_223] : memref<8x256xf32, #tpu.memory_space<vmem>>, vector<1x256xf32>
    %518 = arith.mulf %515, %517 : vector<1x256xf32>
    %519 = vector.broadcast %516 : f32 to vector<1x256xf32>
    %520 = arith.mulf %519, %518 : vector<1x256xf32>
    %521 = arith.addf %514, %520 : vector<1x256xf32>
    %c1_i32_224 = arith.constant 1 : i32
    %522 = tpu.dynamic_rotate %453 by %c1_i32_224 dim 1 : vector<1x256xf32>, i32 -> vector<1x256xf32>
    %c58 = arith.constant 58 : index
    %523 = memref.load %arg1[%c58] : memref<98xf32, #tpu.memory_space<smem>>
    %c4_225 = arith.constant 4 : index
    %c0_226 = arith.constant 0 : index
    %524 = vector.load %arg5[%c4_225, %c0_226] : memref<8x256xf32, #tpu.memory_space<vmem>>, vector<1x256xf32>
    %525 = arith.mulf %522, %524 : vector<1x256xf32>
    %526 = vector.broadcast %523 : f32 to vector<1x256xf32>
    %527 = arith.mulf %526, %525 : vector<1x256xf32>
    %528 = arith.addf %521, %527 : vector<1x256xf32>
    %c255_i32_227 = arith.constant 255 : i32
    %529 = tpu.dynamic_rotate %453 by %c255_i32_227 dim 1 : vector<1x256xf32>, i32 -> vector<1x256xf32>
    %c60 = arith.constant 60 : index
    %530 = memref.load %arg1[%c60] : memref<98xf32, #tpu.memory_space<smem>>
    %c5_228 = arith.constant 5 : index
    %c0_229 = arith.constant 0 : index
    %531 = vector.load %arg5[%c5_228, %c0_229] : memref<8x256xf32, #tpu.memory_space<vmem>>, vector<1x256xf32>
    %532 = arith.mulf %529, %531 : vector<1x256xf32>
    %533 = vector.broadcast %530 : f32 to vector<1x256xf32>
    %534 = arith.mulf %533, %532 : vector<1x256xf32>
    %535 = arith.addf %528, %534 : vector<1x256xf32>
    %c254_i32_230 = arith.constant 254 : i32
    %536 = tpu.dynamic_rotate %453 by %c254_i32_230 dim 1 : vector<1x256xf32>, i32 -> vector<1x256xf32>
    %c61 = arith.constant 61 : index
    %537 = memref.load %arg1[%c61] : memref<98xf32, #tpu.memory_space<smem>>
    %c6_231 = arith.constant 6 : index
    %c0_232 = arith.constant 0 : index
    %538 = vector.load %arg5[%c6_231, %c0_232] : memref<8x256xf32, #tpu.memory_space<vmem>>, vector<1x256xf32>
    %539 = arith.mulf %536, %538 : vector<1x256xf32>
    %540 = vector.broadcast %537 : f32 to vector<1x256xf32>
    %541 = arith.mulf %540, %539 : vector<1x256xf32>
    %542 = arith.addf %535, %541 : vector<1x256xf32>
    %c253_i32_233 = arith.constant 253 : i32
    %543 = tpu.dynamic_rotate %453 by %c253_i32_233 dim 1 : vector<1x256xf32>, i32 -> vector<1x256xf32>
    %c62 = arith.constant 62 : index
    %544 = memref.load %arg1[%c62] : memref<98xf32, #tpu.memory_space<smem>>
    %c7_234 = arith.constant 7 : index
    %c0_235 = arith.constant 0 : index
    %545 = vector.load %arg5[%c7_234, %c0_235] : memref<8x256xf32, #tpu.memory_space<vmem>>, vector<1x256xf32>
    %546 = arith.mulf %543, %545 : vector<1x256xf32>
    %547 = vector.broadcast %544 : f32 to vector<1x256xf32>
    %548 = arith.mulf %547, %546 : vector<1x256xf32>
    %549 = arith.addf %542, %548 : vector<1x256xf32>
    %c32_i32_236 = arith.constant 32 : i32
    %550 = tpu.dynamic_rotate %549 by %c32_i32_236 dim 1 : vector<1x256xf32>, i32 -> vector<1x256xf32>
    %c32_i32_237 = arith.constant 32 : i32
    %551 = vector.broadcast %c32_i32_237 : i32 to vector<1x256xi32>
    %552 = arith.cmpi sge, %16, %551 : vector<1x256xi32>
    %cst_238 = arith.constant 0.000000e+00 : f32
    %553 = vector.broadcast %cst_238 : f32 to vector<1x256xf32>
    %554 = arith.select %552, %550, %553 : vector<1x256xi1>, vector<1x256xf32>
    %555 = arith.addf %504, %554 : vector<1x256xf32>
    %c66 = arith.constant 66 : index
    %556 = memref.load %arg1[%c66] : memref<98xf32, #tpu.memory_space<smem>>
    %557 = vector.broadcast %556 : f32 to vector<1x256xf32>
    %558 = arith.mulf %557, %453 : vector<1x256xf32>
    %c3_i32_239 = arith.constant 3 : i32
    %559 = tpu.dynamic_rotate %453 by %c3_i32_239 dim 1 : vector<1x256xf32>, i32 -> vector<1x256xf32>
    %c63 = arith.constant 63 : index
    %560 = memref.load %arg1[%c63] : memref<98xf32, #tpu.memory_space<smem>>
    %c2_240 = arith.constant 2 : index
    %c0_241 = arith.constant 0 : index
    %561 = vector.load %arg5[%c2_240, %c0_241] : memref<8x256xf32, #tpu.memory_space<vmem>>, vector<1x256xf32>
    %562 = arith.mulf %559, %561 : vector<1x256xf32>
    %563 = vector.broadcast %560 : f32 to vector<1x256xf32>
    %564 = arith.mulf %563, %562 : vector<1x256xf32>
    %565 = arith.addf %558, %564 : vector<1x256xf32>
    %c2_i32_242 = arith.constant 2 : i32
    %566 = tpu.dynamic_rotate %453 by %c2_i32_242 dim 1 : vector<1x256xf32>, i32 -> vector<1x256xf32>
    %c64 = arith.constant 64 : index
    %567 = memref.load %arg1[%c64] : memref<98xf32, #tpu.memory_space<smem>>
    %c3_243 = arith.constant 3 : index
    %c0_244 = arith.constant 0 : index
    %568 = vector.load %arg5[%c3_243, %c0_244] : memref<8x256xf32, #tpu.memory_space<vmem>>, vector<1x256xf32>
    %569 = arith.mulf %566, %568 : vector<1x256xf32>
    %570 = vector.broadcast %567 : f32 to vector<1x256xf32>
    %571 = arith.mulf %570, %569 : vector<1x256xf32>
    %572 = arith.addf %565, %571 : vector<1x256xf32>
    %c1_i32_245 = arith.constant 1 : i32
    %573 = tpu.dynamic_rotate %453 by %c1_i32_245 dim 1 : vector<1x256xf32>, i32 -> vector<1x256xf32>
    %c65 = arith.constant 65 : index
    %574 = memref.load %arg1[%c65] : memref<98xf32, #tpu.memory_space<smem>>
    %c4_246 = arith.constant 4 : index
    %c0_247 = arith.constant 0 : index
    %575 = vector.load %arg5[%c4_246, %c0_247] : memref<8x256xf32, #tpu.memory_space<vmem>>, vector<1x256xf32>
    %576 = arith.mulf %573, %575 : vector<1x256xf32>
    %577 = vector.broadcast %574 : f32 to vector<1x256xf32>
    %578 = arith.mulf %577, %576 : vector<1x256xf32>
    %579 = arith.addf %572, %578 : vector<1x256xf32>
    %c255_i32_248 = arith.constant 255 : i32
    %580 = tpu.dynamic_rotate %453 by %c255_i32_248 dim 1 : vector<1x256xf32>, i32 -> vector<1x256xf32>
    %c67 = arith.constant 67 : index
    %581 = memref.load %arg1[%c67] : memref<98xf32, #tpu.memory_space<smem>>
    %c5_249 = arith.constant 5 : index
    %c0_250 = arith.constant 0 : index
    %582 = vector.load %arg5[%c5_249, %c0_250] : memref<8x256xf32, #tpu.memory_space<vmem>>, vector<1x256xf32>
    %583 = arith.mulf %580, %582 : vector<1x256xf32>
    %584 = vector.broadcast %581 : f32 to vector<1x256xf32>
    %585 = arith.mulf %584, %583 : vector<1x256xf32>
    %586 = arith.addf %579, %585 : vector<1x256xf32>
    %c254_i32_251 = arith.constant 254 : i32
    %587 = tpu.dynamic_rotate %453 by %c254_i32_251 dim 1 : vector<1x256xf32>, i32 -> vector<1x256xf32>
    %c68 = arith.constant 68 : index
    %588 = memref.load %arg1[%c68] : memref<98xf32, #tpu.memory_space<smem>>
    %c6_252 = arith.constant 6 : index
    %c0_253 = arith.constant 0 : index
    %589 = vector.load %arg5[%c6_252, %c0_253] : memref<8x256xf32, #tpu.memory_space<vmem>>, vector<1x256xf32>
    %590 = arith.mulf %587, %589 : vector<1x256xf32>
    %591 = vector.broadcast %588 : f32 to vector<1x256xf32>
    %592 = arith.mulf %591, %590 : vector<1x256xf32>
    %593 = arith.addf %586, %592 : vector<1x256xf32>
    %c253_i32_254 = arith.constant 253 : i32
    %594 = tpu.dynamic_rotate %453 by %c253_i32_254 dim 1 : vector<1x256xf32>, i32 -> vector<1x256xf32>
    %c69 = arith.constant 69 : index
    %595 = memref.load %arg1[%c69] : memref<98xf32, #tpu.memory_space<smem>>
    %c7_255 = arith.constant 7 : index
    %c0_256 = arith.constant 0 : index
    %596 = vector.load %arg5[%c7_255, %c0_256] : memref<8x256xf32, #tpu.memory_space<vmem>>, vector<1x256xf32>
    %597 = arith.mulf %594, %596 : vector<1x256xf32>
    %598 = vector.broadcast %595 : f32 to vector<1x256xf32>
    %599 = arith.mulf %598, %597 : vector<1x256xf32>
    %600 = arith.addf %593, %599 : vector<1x256xf32>
    %c16_i32_257 = arith.constant 16 : i32
    %601 = tpu.dynamic_rotate %600 by %c16_i32_257 dim 1 : vector<1x256xf32>, i32 -> vector<1x256xf32>
    %c16_i32_258 = arith.constant 16 : i32
    %602 = vector.broadcast %c16_i32_258 : i32 to vector<1x256xi32>
    %603 = arith.cmpi sge, %16, %602 : vector<1x256xi32>
    %cst_259 = arith.constant 0.000000e+00 : f32
    %604 = vector.broadcast %cst_259 : f32 to vector<1x256xf32>
    %605 = arith.select %603, %601, %604 : vector<1x256xi1>, vector<1x256xf32>
    %606 = arith.addf %555, %605 : vector<1x256xf32>
    %c73 = arith.constant 73 : index
    %607 = memref.load %arg1[%c73] : memref<98xf32, #tpu.memory_space<smem>>
    %608 = vector.broadcast %607 : f32 to vector<1x256xf32>
    %609 = arith.mulf %608, %453 : vector<1x256xf32>
    %c3_i32_260 = arith.constant 3 : i32
    %610 = tpu.dynamic_rotate %453 by %c3_i32_260 dim 1 : vector<1x256xf32>, i32 -> vector<1x256xf32>
    %c70 = arith.constant 70 : index
    %611 = memref.load %arg1[%c70] : memref<98xf32, #tpu.memory_space<smem>>
    %c2_261 = arith.constant 2 : index
    %c0_262 = arith.constant 0 : index
    %612 = vector.load %arg5[%c2_261, %c0_262] : memref<8x256xf32, #tpu.memory_space<vmem>>, vector<1x256xf32>
    %613 = arith.mulf %610, %612 : vector<1x256xf32>
    %614 = vector.broadcast %611 : f32 to vector<1x256xf32>
    %615 = arith.mulf %614, %613 : vector<1x256xf32>
    %616 = arith.addf %609, %615 : vector<1x256xf32>
    %c2_i32_263 = arith.constant 2 : i32
    %617 = tpu.dynamic_rotate %453 by %c2_i32_263 dim 1 : vector<1x256xf32>, i32 -> vector<1x256xf32>
    %c71 = arith.constant 71 : index
    %618 = memref.load %arg1[%c71] : memref<98xf32, #tpu.memory_space<smem>>
    %c3_264 = arith.constant 3 : index
    %c0_265 = arith.constant 0 : index
    %619 = vector.load %arg5[%c3_264, %c0_265] : memref<8x256xf32, #tpu.memory_space<vmem>>, vector<1x256xf32>
    %620 = arith.mulf %617, %619 : vector<1x256xf32>
    %621 = vector.broadcast %618 : f32 to vector<1x256xf32>
    %622 = arith.mulf %621, %620 : vector<1x256xf32>
    %623 = arith.addf %616, %622 : vector<1x256xf32>
    %c1_i32_266 = arith.constant 1 : i32
    %624 = tpu.dynamic_rotate %453 by %c1_i32_266 dim 1 : vector<1x256xf32>, i32 -> vector<1x256xf32>
    %c72 = arith.constant 72 : index
    %625 = memref.load %arg1[%c72] : memref<98xf32, #tpu.memory_space<smem>>
    %c4_267 = arith.constant 4 : index
    %c0_268 = arith.constant 0 : index
    %626 = vector.load %arg5[%c4_267, %c0_268] : memref<8x256xf32, #tpu.memory_space<vmem>>, vector<1x256xf32>
    %627 = arith.mulf %624, %626 : vector<1x256xf32>
    %628 = vector.broadcast %625 : f32 to vector<1x256xf32>
    %629 = arith.mulf %628, %627 : vector<1x256xf32>
    %630 = arith.addf %623, %629 : vector<1x256xf32>
    %c255_i32_269 = arith.constant 255 : i32
    %631 = tpu.dynamic_rotate %453 by %c255_i32_269 dim 1 : vector<1x256xf32>, i32 -> vector<1x256xf32>
    %c74 = arith.constant 74 : index
    %632 = memref.load %arg1[%c74] : memref<98xf32, #tpu.memory_space<smem>>
    %c5_270 = arith.constant 5 : index
    %c0_271 = arith.constant 0 : index
    %633 = vector.load %arg5[%c5_270, %c0_271] : memref<8x256xf32, #tpu.memory_space<vmem>>, vector<1x256xf32>
    %634 = arith.mulf %631, %633 : vector<1x256xf32>
    %635 = vector.broadcast %632 : f32 to vector<1x256xf32>
    %636 = arith.mulf %635, %634 : vector<1x256xf32>
    %637 = arith.addf %630, %636 : vector<1x256xf32>
    %c254_i32_272 = arith.constant 254 : i32
    %638 = tpu.dynamic_rotate %453 by %c254_i32_272 dim 1 : vector<1x256xf32>, i32 -> vector<1x256xf32>
    %c75 = arith.constant 75 : index
    %639 = memref.load %arg1[%c75] : memref<98xf32, #tpu.memory_space<smem>>
    %c6_273 = arith.constant 6 : index
    %c0_274 = arith.constant 0 : index
    %640 = vector.load %arg5[%c6_273, %c0_274] : memref<8x256xf32, #tpu.memory_space<vmem>>, vector<1x256xf32>
    %641 = arith.mulf %638, %640 : vector<1x256xf32>
    %642 = vector.broadcast %639 : f32 to vector<1x256xf32>
    %643 = arith.mulf %642, %641 : vector<1x256xf32>
    %644 = arith.addf %637, %643 : vector<1x256xf32>
    %c253_i32_275 = arith.constant 253 : i32
    %645 = tpu.dynamic_rotate %453 by %c253_i32_275 dim 1 : vector<1x256xf32>, i32 -> vector<1x256xf32>
    %c76 = arith.constant 76 : index
    %646 = memref.load %arg1[%c76] : memref<98xf32, #tpu.memory_space<smem>>
    %c7_276 = arith.constant 7 : index
    %c0_277 = arith.constant 0 : index
    %647 = vector.load %arg5[%c7_276, %c0_277] : memref<8x256xf32, #tpu.memory_space<vmem>>, vector<1x256xf32>
    %648 = arith.mulf %645, %647 : vector<1x256xf32>
    %649 = vector.broadcast %646 : f32 to vector<1x256xf32>
    %650 = arith.mulf %649, %648 : vector<1x256xf32>
    %651 = arith.addf %644, %650 : vector<1x256xf32>
    %652 = arith.addf %606, %651 : vector<1x256xf32>
    %c80 = arith.constant 80 : index
    %653 = memref.load %arg1[%c80] : memref<98xf32, #tpu.memory_space<smem>>
    %654 = vector.broadcast %653 : f32 to vector<1x256xf32>
    %655 = arith.mulf %654, %453 : vector<1x256xf32>
    %c3_i32_278 = arith.constant 3 : i32
    %656 = tpu.dynamic_rotate %453 by %c3_i32_278 dim 1 : vector<1x256xf32>, i32 -> vector<1x256xf32>
    %c77 = arith.constant 77 : index
    %657 = memref.load %arg1[%c77] : memref<98xf32, #tpu.memory_space<smem>>
    %c2_279 = arith.constant 2 : index
    %c0_280 = arith.constant 0 : index
    %658 = vector.load %arg5[%c2_279, %c0_280] : memref<8x256xf32, #tpu.memory_space<vmem>>, vector<1x256xf32>
    %659 = arith.mulf %656, %658 : vector<1x256xf32>
    %660 = vector.broadcast %657 : f32 to vector<1x256xf32>
    %661 = arith.mulf %660, %659 : vector<1x256xf32>
    %662 = arith.addf %655, %661 : vector<1x256xf32>
    %c2_i32_281 = arith.constant 2 : i32
    %663 = tpu.dynamic_rotate %453 by %c2_i32_281 dim 1 : vector<1x256xf32>, i32 -> vector<1x256xf32>
    %c78 = arith.constant 78 : index
    %664 = memref.load %arg1[%c78] : memref<98xf32, #tpu.memory_space<smem>>
    %c3_282 = arith.constant 3 : index
    %c0_283 = arith.constant 0 : index
    %665 = vector.load %arg5[%c3_282, %c0_283] : memref<8x256xf32, #tpu.memory_space<vmem>>, vector<1x256xf32>
    %666 = arith.mulf %663, %665 : vector<1x256xf32>
    %667 = vector.broadcast %664 : f32 to vector<1x256xf32>
    %668 = arith.mulf %667, %666 : vector<1x256xf32>
    %669 = arith.addf %662, %668 : vector<1x256xf32>
    %c1_i32_284 = arith.constant 1 : i32
    %670 = tpu.dynamic_rotate %453 by %c1_i32_284 dim 1 : vector<1x256xf32>, i32 -> vector<1x256xf32>
    %c79 = arith.constant 79 : index
    %671 = memref.load %arg1[%c79] : memref<98xf32, #tpu.memory_space<smem>>
    %c4_285 = arith.constant 4 : index
    %c0_286 = arith.constant 0 : index
    %672 = vector.load %arg5[%c4_285, %c0_286] : memref<8x256xf32, #tpu.memory_space<vmem>>, vector<1x256xf32>
    %673 = arith.mulf %670, %672 : vector<1x256xf32>
    %674 = vector.broadcast %671 : f32 to vector<1x256xf32>
    %675 = arith.mulf %674, %673 : vector<1x256xf32>
    %676 = arith.addf %669, %675 : vector<1x256xf32>
    %c255_i32_287 = arith.constant 255 : i32
    %677 = tpu.dynamic_rotate %453 by %c255_i32_287 dim 1 : vector<1x256xf32>, i32 -> vector<1x256xf32>
    %c81 = arith.constant 81 : index
    %678 = memref.load %arg1[%c81] : memref<98xf32, #tpu.memory_space<smem>>
    %c5_288 = arith.constant 5 : index
    %c0_289 = arith.constant 0 : index
    %679 = vector.load %arg5[%c5_288, %c0_289] : memref<8x256xf32, #tpu.memory_space<vmem>>, vector<1x256xf32>
    %680 = arith.mulf %677, %679 : vector<1x256xf32>
    %681 = vector.broadcast %678 : f32 to vector<1x256xf32>
    %682 = arith.mulf %681, %680 : vector<1x256xf32>
    %683 = arith.addf %676, %682 : vector<1x256xf32>
    %c254_i32_290 = arith.constant 254 : i32
    %684 = tpu.dynamic_rotate %453 by %c254_i32_290 dim 1 : vector<1x256xf32>, i32 -> vector<1x256xf32>
    %c82 = arith.constant 82 : index
    %685 = memref.load %arg1[%c82] : memref<98xf32, #tpu.memory_space<smem>>
    %c6_291 = arith.constant 6 : index
    %c0_292 = arith.constant 0 : index
    %686 = vector.load %arg5[%c6_291, %c0_292] : memref<8x256xf32, #tpu.memory_space<vmem>>, vector<1x256xf32>
    %687 = arith.mulf %684, %686 : vector<1x256xf32>
    %688 = vector.broadcast %685 : f32 to vector<1x256xf32>
    %689 = arith.mulf %688, %687 : vector<1x256xf32>
    %690 = arith.addf %683, %689 : vector<1x256xf32>
    %c253_i32_293 = arith.constant 253 : i32
    %691 = tpu.dynamic_rotate %453 by %c253_i32_293 dim 1 : vector<1x256xf32>, i32 -> vector<1x256xf32>
    %c83 = arith.constant 83 : index
    %692 = memref.load %arg1[%c83] : memref<98xf32, #tpu.memory_space<smem>>
    %c7_294 = arith.constant 7 : index
    %c0_295 = arith.constant 0 : index
    %693 = vector.load %arg5[%c7_294, %c0_295] : memref<8x256xf32, #tpu.memory_space<vmem>>, vector<1x256xf32>
    %694 = arith.mulf %691, %693 : vector<1x256xf32>
    %695 = vector.broadcast %692 : f32 to vector<1x256xf32>
    %696 = arith.mulf %695, %694 : vector<1x256xf32>
    %697 = arith.addf %690, %696 : vector<1x256xf32>
    %c240_i32_296 = arith.constant 240 : i32
    %698 = tpu.dynamic_rotate %697 by %c240_i32_296 dim 1 : vector<1x256xf32>, i32 -> vector<1x256xf32>
    %c240_i32_297 = arith.constant 240 : i32
    %699 = vector.broadcast %c240_i32_297 : i32 to vector<1x256xi32>
    %700 = arith.cmpi slt, %16, %699 : vector<1x256xi32>
    %cst_298 = arith.constant 0.000000e+00 : f32
    %701 = vector.broadcast %cst_298 : f32 to vector<1x256xf32>
    %702 = arith.select %700, %698, %701 : vector<1x256xi1>, vector<1x256xf32>
    %703 = arith.addf %652, %702 : vector<1x256xf32>
    %c87 = arith.constant 87 : index
    %704 = memref.load %arg1[%c87] : memref<98xf32, #tpu.memory_space<smem>>
    %705 = vector.broadcast %704 : f32 to vector<1x256xf32>
    %706 = arith.mulf %705, %453 : vector<1x256xf32>
    %c3_i32_299 = arith.constant 3 : i32
    %707 = tpu.dynamic_rotate %453 by %c3_i32_299 dim 1 : vector<1x256xf32>, i32 -> vector<1x256xf32>
    %c84 = arith.constant 84 : index
    %708 = memref.load %arg1[%c84] : memref<98xf32, #tpu.memory_space<smem>>
    %c2_300 = arith.constant 2 : index
    %c0_301 = arith.constant 0 : index
    %709 = vector.load %arg5[%c2_300, %c0_301] : memref<8x256xf32, #tpu.memory_space<vmem>>, vector<1x256xf32>
    %710 = arith.mulf %707, %709 : vector<1x256xf32>
    %711 = vector.broadcast %708 : f32 to vector<1x256xf32>
    %712 = arith.mulf %711, %710 : vector<1x256xf32>
    %713 = arith.addf %706, %712 : vector<1x256xf32>
    %c2_i32_302 = arith.constant 2 : i32
    %714 = tpu.dynamic_rotate %453 by %c2_i32_302 dim 1 : vector<1x256xf32>, i32 -> vector<1x256xf32>
    %c85 = arith.constant 85 : index
    %715 = memref.load %arg1[%c85] : memref<98xf32, #tpu.memory_space<smem>>
    %c3_303 = arith.constant 3 : index
    %c0_304 = arith.constant 0 : index
    %716 = vector.load %arg5[%c3_303, %c0_304] : memref<8x256xf32, #tpu.memory_space<vmem>>, vector<1x256xf32>
    %717 = arith.mulf %714, %716 : vector<1x256xf32>
    %718 = vector.broadcast %715 : f32 to vector<1x256xf32>
    %719 = arith.mulf %718, %717 : vector<1x256xf32>
    %720 = arith.addf %713, %719 : vector<1x256xf32>
    %c1_i32_305 = arith.constant 1 : i32
    %721 = tpu.dynamic_rotate %453 by %c1_i32_305 dim 1 : vector<1x256xf32>, i32 -> vector<1x256xf32>
    %c86 = arith.constant 86 : index
    %722 = memref.load %arg1[%c86] : memref<98xf32, #tpu.memory_space<smem>>
    %c4_306 = arith.constant 4 : index
    %c0_307 = arith.constant 0 : index
    %723 = vector.load %arg5[%c4_306, %c0_307] : memref<8x256xf32, #tpu.memory_space<vmem>>, vector<1x256xf32>
    %724 = arith.mulf %721, %723 : vector<1x256xf32>
    %725 = vector.broadcast %722 : f32 to vector<1x256xf32>
    %726 = arith.mulf %725, %724 : vector<1x256xf32>
    %727 = arith.addf %720, %726 : vector<1x256xf32>
    %c255_i32_308 = arith.constant 255 : i32
    %728 = tpu.dynamic_rotate %453 by %c255_i32_308 dim 1 : vector<1x256xf32>, i32 -> vector<1x256xf32>
    %c88 = arith.constant 88 : index
    %729 = memref.load %arg1[%c88] : memref<98xf32, #tpu.memory_space<smem>>
    %c5_309 = arith.constant 5 : index
    %c0_310 = arith.constant 0 : index
    %730 = vector.load %arg5[%c5_309, %c0_310] : memref<8x256xf32, #tpu.memory_space<vmem>>, vector<1x256xf32>
    %731 = arith.mulf %728, %730 : vector<1x256xf32>
    %732 = vector.broadcast %729 : f32 to vector<1x256xf32>
    %733 = arith.mulf %732, %731 : vector<1x256xf32>
    %734 = arith.addf %727, %733 : vector<1x256xf32>
    %c254_i32_311 = arith.constant 254 : i32
    %735 = tpu.dynamic_rotate %453 by %c254_i32_311 dim 1 : vector<1x256xf32>, i32 -> vector<1x256xf32>
    %c89 = arith.constant 89 : index
    %736 = memref.load %arg1[%c89] : memref<98xf32, #tpu.memory_space<smem>>
    %c6_312 = arith.constant 6 : index
    %c0_313 = arith.constant 0 : index
    %737 = vector.load %arg5[%c6_312, %c0_313] : memref<8x256xf32, #tpu.memory_space<vmem>>, vector<1x256xf32>
    %738 = arith.mulf %735, %737 : vector<1x256xf32>
    %739 = vector.broadcast %736 : f32 to vector<1x256xf32>
    %740 = arith.mulf %739, %738 : vector<1x256xf32>
    %741 = arith.addf %734, %740 : vector<1x256xf32>
    %c253_i32_314 = arith.constant 253 : i32
    %742 = tpu.dynamic_rotate %453 by %c253_i32_314 dim 1 : vector<1x256xf32>, i32 -> vector<1x256xf32>
    %c90 = arith.constant 90 : index
    %743 = memref.load %arg1[%c90] : memref<98xf32, #tpu.memory_space<smem>>
    %c7_315 = arith.constant 7 : index
    %c0_316 = arith.constant 0 : index
    %744 = vector.load %arg5[%c7_315, %c0_316] : memref<8x256xf32, #tpu.memory_space<vmem>>, vector<1x256xf32>
    %745 = arith.mulf %742, %744 : vector<1x256xf32>
    %746 = vector.broadcast %743 : f32 to vector<1x256xf32>
    %747 = arith.mulf %746, %745 : vector<1x256xf32>
    %748 = arith.addf %741, %747 : vector<1x256xf32>
    %c224_i32_317 = arith.constant 224 : i32
    %749 = tpu.dynamic_rotate %748 by %c224_i32_317 dim 1 : vector<1x256xf32>, i32 -> vector<1x256xf32>
    %c224_i32_318 = arith.constant 224 : i32
    %750 = vector.broadcast %c224_i32_318 : i32 to vector<1x256xi32>
    %751 = arith.cmpi slt, %16, %750 : vector<1x256xi32>
    %cst_319 = arith.constant 0.000000e+00 : f32
    %752 = vector.broadcast %cst_319 : f32 to vector<1x256xf32>
    %753 = arith.select %751, %749, %752 : vector<1x256xi1>, vector<1x256xf32>
    %754 = arith.addf %703, %753 : vector<1x256xf32>
    %c94 = arith.constant 94 : index
    %755 = memref.load %arg1[%c94] : memref<98xf32, #tpu.memory_space<smem>>
    %756 = vector.broadcast %755 : f32 to vector<1x256xf32>
    %757 = arith.mulf %756, %453 : vector<1x256xf32>
    %c3_i32_320 = arith.constant 3 : i32
    %758 = tpu.dynamic_rotate %453 by %c3_i32_320 dim 1 : vector<1x256xf32>, i32 -> vector<1x256xf32>
    %c91 = arith.constant 91 : index
    %759 = memref.load %arg1[%c91] : memref<98xf32, #tpu.memory_space<smem>>
    %c2_321 = arith.constant 2 : index
    %c0_322 = arith.constant 0 : index
    %760 = vector.load %arg5[%c2_321, %c0_322] : memref<8x256xf32, #tpu.memory_space<vmem>>, vector<1x256xf32>
    %761 = arith.mulf %758, %760 : vector<1x256xf32>
    %762 = vector.broadcast %759 : f32 to vector<1x256xf32>
    %763 = arith.mulf %762, %761 : vector<1x256xf32>
    %764 = arith.addf %757, %763 : vector<1x256xf32>
    %c2_i32_323 = arith.constant 2 : i32
    %765 = tpu.dynamic_rotate %453 by %c2_i32_323 dim 1 : vector<1x256xf32>, i32 -> vector<1x256xf32>
    %c92 = arith.constant 92 : index
    %766 = memref.load %arg1[%c92] : memref<98xf32, #tpu.memory_space<smem>>
    %c3_324 = arith.constant 3 : index
    %c0_325 = arith.constant 0 : index
    %767 = vector.load %arg5[%c3_324, %c0_325] : memref<8x256xf32, #tpu.memory_space<vmem>>, vector<1x256xf32>
    %768 = arith.mulf %765, %767 : vector<1x256xf32>
    %769 = vector.broadcast %766 : f32 to vector<1x256xf32>
    %770 = arith.mulf %769, %768 : vector<1x256xf32>
    %771 = arith.addf %764, %770 : vector<1x256xf32>
    %c1_i32_326 = arith.constant 1 : i32
    %772 = tpu.dynamic_rotate %453 by %c1_i32_326 dim 1 : vector<1x256xf32>, i32 -> vector<1x256xf32>
    %c93 = arith.constant 93 : index
    %773 = memref.load %arg1[%c93] : memref<98xf32, #tpu.memory_space<smem>>
    %c4_327 = arith.constant 4 : index
    %c0_328 = arith.constant 0 : index
    %774 = vector.load %arg5[%c4_327, %c0_328] : memref<8x256xf32, #tpu.memory_space<vmem>>, vector<1x256xf32>
    %775 = arith.mulf %772, %774 : vector<1x256xf32>
    %776 = vector.broadcast %773 : f32 to vector<1x256xf32>
    %777 = arith.mulf %776, %775 : vector<1x256xf32>
    %778 = arith.addf %771, %777 : vector<1x256xf32>
    %c255_i32_329 = arith.constant 255 : i32
    %779 = tpu.dynamic_rotate %453 by %c255_i32_329 dim 1 : vector<1x256xf32>, i32 -> vector<1x256xf32>
    %c95 = arith.constant 95 : index
    %780 = memref.load %arg1[%c95] : memref<98xf32, #tpu.memory_space<smem>>
    %c5_330 = arith.constant 5 : index
    %c0_331 = arith.constant 0 : index
    %781 = vector.load %arg5[%c5_330, %c0_331] : memref<8x256xf32, #tpu.memory_space<vmem>>, vector<1x256xf32>
    %782 = arith.mulf %779, %781 : vector<1x256xf32>
    %783 = vector.broadcast %780 : f32 to vector<1x256xf32>
    %784 = arith.mulf %783, %782 : vector<1x256xf32>
    %785 = arith.addf %778, %784 : vector<1x256xf32>
    %c254_i32_332 = arith.constant 254 : i32
    %786 = tpu.dynamic_rotate %453 by %c254_i32_332 dim 1 : vector<1x256xf32>, i32 -> vector<1x256xf32>
    %c96 = arith.constant 96 : index
    %787 = memref.load %arg1[%c96] : memref<98xf32, #tpu.memory_space<smem>>
    %c6_333 = arith.constant 6 : index
    %c0_334 = arith.constant 0 : index
    %788 = vector.load %arg5[%c6_333, %c0_334] : memref<8x256xf32, #tpu.memory_space<vmem>>, vector<1x256xf32>
    %789 = arith.mulf %786, %788 : vector<1x256xf32>
    %790 = vector.broadcast %787 : f32 to vector<1x256xf32>
    %791 = arith.mulf %790, %789 : vector<1x256xf32>
    %792 = arith.addf %785, %791 : vector<1x256xf32>
    %c253_i32_335 = arith.constant 253 : i32
    %793 = tpu.dynamic_rotate %453 by %c253_i32_335 dim 1 : vector<1x256xf32>, i32 -> vector<1x256xf32>
    %c97 = arith.constant 97 : index
    %794 = memref.load %arg1[%c97] : memref<98xf32, #tpu.memory_space<smem>>
    %c7_336 = arith.constant 7 : index
    %c0_337 = arith.constant 0 : index
    %795 = vector.load %arg5[%c7_336, %c0_337] : memref<8x256xf32, #tpu.memory_space<vmem>>, vector<1x256xf32>
    %796 = arith.mulf %793, %795 : vector<1x256xf32>
    %797 = vector.broadcast %794 : f32 to vector<1x256xf32>
    %798 = arith.mulf %797, %796 : vector<1x256xf32>
    %799 = arith.addf %792, %798 : vector<1x256xf32>
    %c208_i32_338 = arith.constant 208 : i32
    %800 = tpu.dynamic_rotate %799 by %c208_i32_338 dim 1 : vector<1x256xf32>, i32 -> vector<1x256xf32>
    %c208_i32_339 = arith.constant 208 : i32
    %801 = vector.broadcast %c208_i32_339 : i32 to vector<1x256xi32>
    %802 = arith.cmpi slt, %16, %801 : vector<1x256xi32>
    %cst_340 = arith.constant 0.000000e+00 : f32
    %803 = vector.broadcast %cst_340 : f32 to vector<1x256xf32>
    %804 = arith.select %802, %800, %803 : vector<1x256xi1>, vector<1x256xf32>
    %805 = arith.addf %754, %804 : vector<1x256xf32>
    %c0_341 = arith.constant 0 : index
    %806 = memref.load %arg2[%c0_341] : memref<2xf32, #tpu.memory_space<smem>>
    %807 = vector.broadcast %806 : f32 to vector<1x256xf32>
    %808 = arith.mulf %805, %807 : vector<1x256xf32>
    %c1_342 = arith.constant 1 : index
    %809 = memref.load %arg2[%c1_342] : memref<2xf32, #tpu.memory_space<smem>>
    %810 = vector.broadcast %809 : f32 to vector<1x256xf32>
    %811 = arith.addf %808, %810 : vector<1x256xf32>
    %812 = arith.negf %811 : vector<1x256xf32>
    %813 = math.exp %812 : vector<1x256xf32>
    %cst_343 = arith.constant 1.000000e+00 : f32
    %814 = vector.broadcast %cst_343 : f32 to vector<1x256xf32>
    %815 = arith.addf %814, %813 : vector<1x256xf32>
    %816 = arith.divf %814, %815 : vector<1x256xf32>
    %817 = vector.shape_cast %816 : vector<1x256xf32> to vector<1x256xf32>
    %818 = vector.broadcast %817 : vector<1x256xf32> to vector<8x256xf32>
    %c0_344 = arith.constant 0 : index
    %c0_345 = arith.constant 0 : index
    %819 = vector.load %arg6[%c0_344, %c0_345] : memref<8x256xf32, #tpu.memory_space<vmem>>, vector<8x256xf32>
    tpu.vector_store %arg6[%c0_344, %c0_345], %818 {strides = array<i32>} : memref<8x256xf32, #tpu.memory_space<vmem>>, vector<8x256xf32>,
    %c0_346 = arith.constant 0 : index
    %c0_347 = arith.constant 0 : index
    %c0_348 = arith.constant 0 : index
    %820 = vector.load %arg3[%c0_346, %c0_347, %c0_348] : memref<1x4x256xf32, #tpu.memory_space<vmem>>, vector<1x1x256xf32>
    %821 = vector.shape_cast %820 : vector<1x1x256xf32> to vector<1x256xf32>
    %c0_349 = arith.constant 0 : index
    %c0_350 = arith.constant 0 : index
    %822 = vector.load %arg6[%c0_349, %c0_350] : memref<8x256xf32, #tpu.memory_space<vmem>>, vector<1x256xf32>
    %823 = arith.mulf %821, %822 : vector<1x256xf32>
    %c0_351 = arith.constant 0 : index
    %c0_352 = arith.constant 0 : index
    %c0_353 = arith.constant 0 : index
    %824 = vector.load %arg4[%c0_351, %c0_352, %c0_353] : memref<1x4x256xf32, #tpu.memory_space<vmem>>, vector<1x1x256xf32>
    %825 = vector.shape_cast %824 : vector<1x1x256xf32> to vector<1x256xf32>
    %826 = vector.shape_cast %823 : vector<1x256xf32> to vector<1x1x256xf32>
    tpu.vector_store %arg4[%c0_351, %c0_352, %c0_353], %826 {strides = array<i32>} : memref<1x4x256xf32, #tpu.memory_space<vmem>>, vector<1x1x256xf32>,
    %c0_354 = arith.constant 0 : index
    %c1_355 = arith.constant 1 : index
    %c0_356 = arith.constant 0 : index
    %827 = vector.load %arg3[%c0_354, %c1_355, %c0_356] : memref<1x4x256xf32, #tpu.memory_space<vmem>>, vector<1x1x256xf32>
    %828 = vector.shape_cast %827 : vector<1x1x256xf32> to vector<1x256xf32>
    %c0_357 = arith.constant 0 : index
    %c0_358 = arith.constant 0 : index
    %829 = vector.load %arg6[%c0_357, %c0_358] : memref<8x256xf32, #tpu.memory_space<vmem>>, vector<1x256xf32>
    %830 = arith.mulf %828, %829 : vector<1x256xf32>
    %c0_359 = arith.constant 0 : index
    %c1_360 = arith.constant 1 : index
    %c0_361 = arith.constant 0 : index
    %831 = vector.load %arg4[%c0_359, %c1_360, %c0_361] : memref<1x4x256xf32, #tpu.memory_space<vmem>>, vector<1x1x256xf32>
    %832 = vector.shape_cast %831 : vector<1x1x256xf32> to vector<1x256xf32>
    %833 = vector.shape_cast %830 : vector<1x256xf32> to vector<1x1x256xf32>
    tpu.vector_store %arg4[%c0_359, %c1_360, %c0_361], %833 {strides = array<i32>} : memref<1x4x256xf32, #tpu.memory_space<vmem>>, vector<1x1x256xf32>,
    %c0_362 = arith.constant 0 : index
    %c2_363 = arith.constant 2 : index
    %c0_364 = arith.constant 0 : index
    %834 = vector.load %arg3[%c0_362, %c2_363, %c0_364] : memref<1x4x256xf32, #tpu.memory_space<vmem>>, vector<1x1x256xf32>
    %835 = vector.shape_cast %834 : vector<1x1x256xf32> to vector<1x256xf32>
    %c0_365 = arith.constant 0 : index
    %c0_366 = arith.constant 0 : index
    %836 = vector.load %arg6[%c0_365, %c0_366] : memref<8x256xf32, #tpu.memory_space<vmem>>, vector<1x256xf32>
    %837 = arith.mulf %835, %836 : vector<1x256xf32>
    %c0_367 = arith.constant 0 : index
    %c2_368 = arith.constant 2 : index
    %c0_369 = arith.constant 0 : index
    %838 = vector.load %arg4[%c0_367, %c2_368, %c0_369] : memref<1x4x256xf32, #tpu.memory_space<vmem>>, vector<1x1x256xf32>
    %839 = vector.shape_cast %838 : vector<1x1x256xf32> to vector<1x256xf32>
    %840 = vector.shape_cast %837 : vector<1x256xf32> to vector<1x1x256xf32>
    tpu.vector_store %arg4[%c0_367, %c2_368, %c0_369], %840 {strides = array<i32>} : memref<1x4x256xf32, #tpu.memory_space<vmem>>, vector<1x1x256xf32>,
    %c0_370 = arith.constant 0 : index
    %c3_371 = arith.constant 3 : index
    %c0_372 = arith.constant 0 : index
    %841 = vector.load %arg3[%c0_370, %c3_371, %c0_372] : memref<1x4x256xf32, #tpu.memory_space<vmem>>, vector<1x1x256xf32>
    %842 = vector.shape_cast %841 : vector<1x1x256xf32> to vector<1x256xf32>
    %c0_373 = arith.constant 0 : index
    %c0_374 = arith.constant 0 : index
    %843 = vector.load %arg6[%c0_373, %c0_374] : memref<8x256xf32, #tpu.memory_space<vmem>>, vector<1x256xf32>
    %844 = arith.mulf %842, %843 : vector<1x256xf32>
    %c0_375 = arith.constant 0 : index
    %c3_376 = arith.constant 3 : index
    %c0_377 = arith.constant 0 : index
    %845 = vector.load %arg4[%c0_375, %c3_376, %c0_377] : memref<1x4x256xf32, #tpu.memory_space<vmem>>, vector<1x1x256xf32>
    %846 = vector.shape_cast %845 : vector<1x1x256xf32> to vector<1x256xf32>
    %847 = vector.shape_cast %844 : vector<1x256xf32> to vector<1x1x256xf32>
    tpu.vector_store %arg4[%c0_375, %c3_376, %c0_377], %847 {strides = array<i32>} : memref<1x4x256xf32, #tpu.memory_space<vmem>>, vector<1x1x256xf32>,
    return
  }
  func.func @transform_0(%arg0: i32) -> i32 {
    %c0_i32 = arith.constant 0 : i32
    %c0_i32_0 = arith.constant 0 : i32
    return %c0_i32 : i32
  }
  func.func @transform_1(%arg0: i32) -> i32 {
    %c0_i32 = arith.constant 0 : i32
    %c0_i32_0 = arith.constant 0 : i32
    return %c0_i32 : i32
  }
  func.func @transform_2(%arg0: i32) -> (i32, i32, i32) {
    %c0_i32 = arith.constant 0 : i32
    %c0_i32_0 = arith.constant 0 : i32
    %c0_i32_1 = arith.constant 0 : i32
    return %arg0, %c0_i32, %c0_i32_0 : i32, i32, i32
  }
  func.func @transform_3(%arg0: i32) -> (i32, i32, i32) {
    %c0_i32 = arith.constant 0 : i32
    %c0_i32_0 = arith.constant 0 : i32
    %c0_i32_1 = arith.constant 0 : i32
    return %arg0, %c0_i32, %c0_i32_0 : i32, i32, i32
  }
}

</mosaic_0001>

<llo_original>
// kernel: tpu_custom_call.1
$region0: #{tpu_custom_call.1}
  #allocation0 [shape = 'u32[]', space=smem, size = 0x4, offset = 0x4, fixed_abs, tag = 'smem constant byte address 0x4 - core index']
  #allocation1 [shape = 'u32[72,128]{1,0:T(1,128)}', space=vmem, size = 0x9000, scoped, tag = 'internal scratch']
  #allocation2 [shape = 'f32[8,256]{1,0:T(8,128)}', space=vmem, size = 0x2000, scoped, tag = 'scratch operand']
  #allocation3 [shape = 'f32[8,256]{1,0:T(8,128)}', space=vmem, size = 0x2000, scoped, tag = 'scratch operand']
  %s0 = inlined_call_operand.hbm [shape: f32[98], index: 0, kind: input, shape index: {}]
  %s1 = inlined_call_operand.hbm [shape: f32[2], index: 1, kind: input, shape index: {}]
  %s2 = inlined_call_operand.hbm [shape: f32[2,4,256], index: 2, kind: input, shape index: {}]
  %s3 = inlined_call_operand.hbm [shape: f32[2,4,256], index: 3, kind: output, shape index: {}]
  %s4 = sld [smem:[#allocation0]]
  $region57: #{tpu_custom_call.1} parent=0
    _
  %s6 = ssub.s32 1, %s4
  %s7 = scalar_select 0, %s6, %s4
  $region1: #{tpu_custom_call.1} parent=0
    #allocation4 [shape = 'u8[512]{0}', space=smem, size = 0x200, scoped, tag = 'input window, operand 0, single buffered']
    #allocation5 [shape = 's32[2]{0}', space=sflag, size = 0x8, scoped, tag = 'scoped memory for tpu_custom_call.1']
    #allocation6 [shape = 's32[2]{0}', space=sflag, size = 0x8, scoped, tag = 'scoped memory for tpu_custom_call.1']
    #allocation7 [shape = 's32[2]{0}', space=sflag, size = 0x8, scoped, tag = 'scoped memory for tpu_custom_call.1']
    #allocation8 [shape = 'u8[512]{0}', space=smem, size = 0x200, scoped, tag = 'input window, operand 1, single buffered']
    #allocation9 [shape = 's32[1]{0}', space=sflag, size = 0x4, scoped, tag = 'scoped memory for tpu_custom_call.1']
    #allocation10 [shape = 'u8[8192]{0}', space=vmem, size = 0x2000, scoped, tag = 'input window, operand 2']
    #allocation11 [shape = 'u8[8192]{0}', space=vmem, size = 0x2000, scoped, tag = 'output window, operand 0']
    %8 = vsyncpa [#allocation7], 0
    %9 = vsyncpa [#allocation9], 0
    %10 = vsyncpa [#allocation5], 0
    %s11 = scalar_lea.sflag [#allocation5], 1
    %12 = vsyncpa %s11, 0
    %13 = vsyncpa [#allocation6], 0
    %s14 = scalar_lea.sflag [#allocation6], 1
    %15 = vsyncpa %s14, 0
    loop: start=0, step=1, limit=4
    $region2: #{tpu_custom_call.1} parent=1 // loop_pre_header
      _
    $region3: #{tpu_custom_call.1} parent=1 // loop_header
      %s17 = sphi 0, %s21
      %p18 = scmp.ge.s32.totalorder %s17, 4
      %s25 = sphi 0, %s25
      %s27 = sphi 0, %s25
      %s28 = sphi 0, %s27
      %s42 = sphi 0, %s28
      %s46 = sphi 0, %s46
      %s48 = sphi 0, %s46
      %s49 = sphi 0, %s48
      %s63 = sphi 0, %s49
      %s69 = sphi 0, %s71
      %s72 = sphi 0, %s69
      %s73 = sphi 0, %s72
      %s89 = sphi 0, %s73
      %s95 = sphi 0, %s97
      %s98 = sphi 0, %s95
      %s99 = sphi 0, %s98
      %s115 = sphi 0, %s99
    $region4: #{tpu_custom_call.1} parent=1 // loop_header_branch
      %20 = sbr.rel (%p18) target = $region8
    $region5: #{tpu_custom_call.1} parent=1 // loop_body
      %s22 = ssub.s32 %s17, 1
      %s23 = ssub.s32 %s17, 2
      %s24 = sadd.s32 %s17, 1
      %s26 = sadd.s32 %s25, 1
      %p29 = scmp.eq.s32.totalorder %s17, 1
      %p30 = scmp.ne.s32.totalorder %s25, %s27
      %p31 = scmp.eq.s32.totalorder %s17, 0
      %p32 = por %p30, %p31
      %p33 = scmp.ne.s32.totalorder %s25, %s27
      %p34 = scmp.eq.s32.totalorder %s22, 1
      %p35 = por %p33, %p34
      %p36 = scmp.ne.s32.totalorder %s27, %s28
      %p37 = scmp.eq.s32.totalorder %s22, 0
      %p38 = por %p36, %p37
      %p39 = scmp.ne.s32.totalorder %s27, %s28
      %p40 = scmp.eq.s32.totalorder %s23, 1
      %p41 = por %p39, %p40
      %p43 = scmp.ne.s32.totalorder %s28, %s42
      %p44 = scmp.eq.s32.totalorder %s23, 0
      %p45 = por %p43, %p44
      %s47 = sadd.s32 %s46, 1
      %p50 = scmp.eq.s32.totalorder %s17, 1
      %p51 = scmp.ne.s32.totalorder %s46, %s48
      %p52 = scmp.eq.s32.totalorder %s17, 0
      %p53 = por %p51, %p52
      %p54 = scmp.ne.s32.totalorder %s46, %s48
      %p55 = scmp.eq.s32.totalorder %s22, 1
      %p56 = por %p54, %p55
      %p57 = scmp.ne.s32.totalorder %s48, %s49
      %p58 = scmp.eq.s32.totalorder %s22, 0
      %p59 = por %p57, %p58
      %p60 = scmp.ne.s32.totalorder %s48, %s49
      %p61 = scmp.eq.s32.totalorder %s23, 1
      %p62 = por %p60, %p61
      %p64 = scmp.ne.s32.totalorder %s49, %s63
      %p65 = scmp.eq.s32.totalorder %s23, 0
      %p66 = por %p64, %p65
      %s67 = ssub.s32 %s17, %s24
      %p68 = scmp.eq.s32.totalorder %s67, 0
      %s70 = sadd.s32 %s69, 1
      %s71 = scalar_select %p68, %s69, %s70
      %p74 = pneg %p68
      %p75 = scmp.eq.s32.totalorder %s17, 1
      %p76 = por %p74, %p75
      %p77 = scmp.ne.s32.totalorder %s69, %s72
      %p78 = scmp.eq.s32.totalorder %s17, 0
      %p79 = por %p77, %p78
      %p80 = scmp.ne.s32.totalorder %s69, %s72
      %p81 = scmp.eq.s32.totalorder %s22, 1
      %p82 = por %p80, %p81
      %p83 = scmp.ne.s32.totalorder %s72, %s73
      %p84 = scmp.eq.s32.totalorder %s22, 0
      %p85 = por %p83, %p84
      %p86 = scmp.ne.s32.totalorder %s72, %s73
      %p87 = scmp.eq.s32.totalorder %s23, 1
      %p88 = por %p86, %p87
      %p90 = scmp.ne.s32.totalorder %s73, %s89
      %p91 = scmp.eq.s32.totalorder %s23, 0
      %p92 = por %p90, %p91
      %s93 = ssub.s32 %s17, %s24
      %p94 = scmp.eq.s32.totalorder %s93, 0
      %s96 = sadd.s32 %s95, 1
      %s97 = scalar_select %p94, %s95, %s96
      %p100 = pneg %p94
      %p101 = scmp.eq.s32.totalorder %s17, 1
      %p102 = por %p100, %p101
      %p103 = scmp.ne.s32.totalorder %s95, %s98
      %p104 = scmp.eq.s32.totalorder %s17, 0
      %p105 = por %p103, %p104
      %p106 = scmp.ne.s32.totalorder %s95, %s98
      %p107 = scmp.eq.s32.totalorder %s22, 1
      %p108 = por %p106, %p107
      %p109 = scmp.ne.s32.totalorder %s98, %s99
      %p110 = scmp.eq.s32.totalorder %s22, 0
      %p111 = por %p109, %p110
      %p112 = scmp.ne.s32.totalorder %s98, %s99
      %p113 = scmp.eq.s32.totalorder %s23, 1
      %p114 = por %p112, %p113
      %p116 = scmp.ne.s32.totalorder %s99, %s115
      %p117 = scmp.eq.s32.totalorder %s23, 0
      %p118 = por %p116, %p117
      %p119 = scmp.le.s32.totalorder 1, %s17
      %p120 = scmp.lt.s32.totalorder %s17, 3
      %p121 = pnand %p119, %p120
      %p122 = pneg %p121
      // Predicated region
      $region9: #{tpu_custom_call.1} parent=5 // pred_check
        _
      $region10: #{tpu_custom_call.1} parent=5 // pred_check_branch
        %124 = sbr.rel (%p121) target = $region12
      $region11: #{tpu_custom_call.1} parent=5 // pred_region
        %s125 = ssub.s32 %s17, 1
        // Predicated region
        $region13: #{tpu_custom_call.1} parent=11 // pred_check
          %p126 = pneg %p38
        $region14: #{tpu_custom_call.1} parent=11 // pred_check_branch
          %128 = sbr.rel (%p126) target = $region16
        $region15: #{tpu_custom_call.1} parent=11 // pred_region
          %130 = vsyncadd [#allocation7], 0
          %s132 = sshll.u32 %s0, 4
          %s133 = int_to_ptr.hbm [resolvable:$true] %s132
          %135 = dma.hbm_to_smem %s133, 16, [#allocation4], [#allocation7]
        $region16: #{tpu_custom_call.1} parent=11 // pred_fallthru
          _
        // Predicated region
        $region17: #{tpu_custom_call.1} parent=11 // pred_check
          %p136 = pneg %p59
        $region18: #{tpu_custom_call.1} parent=11 // pred_check_branch
          %138 = sbr.rel (%p136) target = $region20
        $region19: #{tpu_custom_call.1} parent=11 // pred_region
          %140 = vsyncadd [#allocation9], 0
          %s142 = sshll.u32 %s1, 4
          %s143 = int_to_ptr.hbm [resolvable:$true] %s142
          %145 = dma.hbm_to_smem %s143, 16, [#allocation8], [#allocation9]
        $region20: #{tpu_custom_call.1} parent=11 // pred_fallthru
          _
      $region12: #{tpu_custom_call.1} parent=5 // pred_fallthru
        _
      %p146 = scmp.lt.s32.totalorder %s17, 2
      // Predicated region
      $region21: #{tpu_custom_call.1} parent=5 // pred_check
        %p147 = pneg %p146
      $region22: #{tpu_custom_call.1} parent=5 // pred_check_branch
        %149 = sbr.rel (%p147) target = $region24
      $region23: #{tpu_custom_call.1} parent=5 // pred_region
        // Predicated region
        $region25: #{tpu_custom_call.1} parent=23 // pred_check
          %p150 = pneg %p79
        $region26: #{tpu_custom_call.1} parent=23 // pred_check_branch
          %152 = sbr.rel (%p150) target = $region28
        $region27: #{tpu_custom_call.1} parent=23 // pred_region
          %s153 = sand.u32 %s69, 1
          %s154 = scalar_lea.sflag [#allocation5], %s153
          %s155 = sand.u32 %s69, 1
          %s156 = smul.addr %s155, 8
          %s157 = scalar_lea.vmem [#allocation10], %s156
          %159 = vsyncadd %s154, 0
          %s160 = smul.addr %s17, 2
          %s161 = smul.addr %s160, 4
          %s162 = scalar_lea.hbm %s2, %s161
          %s164 = sshll.u32 %s162, 4
          %s165 = int_to_ptr.hbm [resolvable:$true] %s164
          %s166 = sshll.u32 %s157, 4
          %s167 = int_to_ptr.vmem [resolvable:$true] %s166
          %169 = dma.hbm_to_vmem [thread:$0]  %s165, 128, %s167, %s154
        $region28: #{tpu_custom_call.1} parent=23 // pred_fallthru
          _
      $region24: #{tpu_custom_call.1} parent=5 // pred_fallthru
        _
      %p170 = scmp.le.s32.totalorder 1, %s17
      %p171 = scmp.lt.s32.totalorder %s17, 3
      %p172 = pnand %p170, %p171
      %p173 = pneg %p172
      // Predicated region
      $region29: #{tpu_custom_call.1} parent=5 // pred_check
        _
      $region30: #{tpu_custom_call.1} parent=5 // pred_check_branch
        %175 = sbr.rel (%p172) target = $region32
      $region31: #{tpu_custom_call.1} parent=5 // pred_region
        %s176 = ssub.s32 %s17, 1
        // Predicated region
        $region33: #{tpu_custom_call.1} parent=31 // pred_check
          %p177 = pneg %p38
        $region34: #{tpu_custom_call.1} parent=31 // pred_check_branch
          %179 = sbr.rel (%p177) target = $region36
        $region35: #{tpu_custom_call.1} parent=31 // pred_region
          %181 = dma.done [#allocation7], 16
        $region36: #{tpu_custom_call.1} parent=31 // pred_fallthru
          _
        // Predicated region
        $region37: #{tpu_custom_call.1} parent=31 // pred_check
          %p182 = pneg %p59
        $region38: #{tpu_custom_call.1} parent=31 // pred_check_branch
          %184 = sbr.rel (%p182) target = $region40
        $region39: #{tpu_custom_call.1} parent=31 // pred_region
          %186 = dma.done [#allocation9], 16
        $region40: #{tpu_custom_call.1} parent=31 // pred_fallthru
          _
        %s187 = sand.u32 %s72, 1
        %s188 = scalar_lea.sflag [#allocation5], %s187
        %s189 = sand.u32 %s72, 1
        %s190 = smul.addr %s189, 8
        %s191 = scalar_lea.vmem [#allocation10], %s190
        // Predicated region
        $region41: #{tpu_custom_call.1} parent=31 // pred_check
          %p192 = pneg %p85
        $region42: #{tpu_custom_call.1} parent=31 // pred_check_branch
          %194 = sbr.rel (%p192) target = $region44
        $region43: #{tpu_custom_call.1} parent=31 // pred_region
          %196 = dma.done %s188, 128
        $region44: #{tpu_custom_call.1} parent=31 // pred_fallthru
          _
        %197 = sfence
        %p198 = pneg %p38
        %p199 = pneg %p35
        %p200 = pneg %p59
        %p201 = pneg %p56
        %s202 = sand.u32 %s72, 1
        %s203 = scalar_lea.sflag [#allocation5], %s202
        %s204 = sand.u32 %s72, 1
        %s205 = smul.addr %s204, 8
        %s206 = scalar_lea.vmem [#allocation10], %s205
        %p207 = pneg %p85
        %p208 = pneg %p82
        %p209 = pneg %p111
        %p210 = pneg %p108
        %s211 = sand.u32 %s98, 1
        %s212 = scalar_lea.sflag [#allocation6], %s211
        %s213 = sand.u32 %s98, 1
        %s214 = smul.addr %s213, 8
        %s215 = scalar_lea.vmem [#allocation11], %s214
        %v216 = vld [vmem:[%s191] ss:$4 sm:$0x3]
        %s217 = scalar_lea.vmem %s191, 1 [#allocation10]
        %v218 = vld [vmem:[%s217] ss:$4 sm:$0x3]
        %v219 = vmax.f32 %v216, %v218
        %v220 = vadd.f32 %v216, %v218
        %s221 = scalar_lea.vmem %s191, 2 [#allocation10]
        %v222 = vld [vmem:[%s221] ss:$4 sm:$0x3]
        %v223 = vmax.f32 %v219, %v222
        %v224 = vadd.f32 %v220, %v222
        %s225 = scalar_lea.vmem %s191, 3 [#allocation10]
        %v226 = vld [vmem:[%s225] ss:$4 sm:$0x3]
        %v227 = vmax.f32 %v223, %v226
        %v228 = vadd.f32 %v224, %v226
        %v229 = vmul.f32 %v228, 0.25
        %v230 = vlaneseq
        %v231 = vand.u32 %v230, 127
        %v232 = vadd.s32 %v231, 128
        %v233 = vand.u32 %v231, 15
        %v234 = vand.u32 %v232, 15
        %v235 = vlaneseq
        %vm236 = vcmp.ge.s32.totalorder %v235, 0
        %vm237 = vcmp.lt.s32.totalorder %v235, 256
        %vm238 = vmand %vm236, %vm237
        %239 = vst.msk [vmem:[#allocation2] ss:$8 sm:$0x3] %vm238, %v227
        %240 = vst.msk [vmem:[#allocation2] ss:$8 sm:$0x0] %vm238, %v227
        %s241 = scalar_lea.vmem [#allocation2], 1
        %242 = vst.msk [vmem:[%s241] ss:$8 sm:$0x3] %vm238, %v229
        %243 = vst.msk [vmem:[%s241] ss:$8 sm:$0x0] %vm238, %v229
        %v244 = vadd.s32 %v233, 4294967293
        %v245 = vadd.s32 %v234, 4294967293
        %vm246 = vcmp.ge.s32.totalorder %v244, 0
        %vm247 = vcmp.ge.s32.totalorder %v245, 0
        %vm248 = vcmp.lt.s32.totalorder %v244, 16
        %vm249 = vcmp.lt.s32.totalorder %v245, 16
        %vm250 = vmand %vm246, %vm248
        %vm251 = vmand %vm247, %vm249
        %v252 = vsel %vm250, 1.0, 0.0
        %v253 = vsel %vm251, 1.0, 0.0
        %v256 = vrot.slane %v253, 7
        %vm257 = vcmask 1040384
        %v258 = vsel %vm257, %v252, %v256
        %s260 = scalar_lea.vmem [#allocation2], 2
        %261 = vst.msk [vmem:[%s260] ss:$8 sm:$0x3] %vm238, %v258
        %262 = vst.msk [vmem:[%s260] ss:$8 sm:$0x0] %vm238, %v258
        %v263 = vadd.s32 %v233, 4294967294
        %v264 = vadd.s32 %v234, 4294967294
        %vm265 = vcmp.ge.s32.totalorder %v263, 0
        %vm266 = vcmp.ge.s32.totalorder %v264, 0
        %vm267 = vcmp.lt.s32.totalorder %v263, 16
        %vm268 = vcmp.lt.s32.totalorder %v264, 16
        %vm269 = vmand %vm265, %vm267
        %vm270 = vmand %vm266, %vm268
        %v271 = vsel %vm269, 1.0, 0.0
        %v272 = vsel %vm270, 1.0, 0.0
        %v275 = vrot.slane %v272, 7
        %v276 = vsel %vm257, %v271, %v275
        %s278 = scalar_lea.vmem [#allocation2], 3
        %279 = vst.msk [vmem:[%s278] ss:$8 sm:$0x3] %vm238, %v276
        %280 = vst.msk [vmem:[%s278] ss:$8 sm:$0x0] %vm238, %v276
        %v281 = vadd.s32 %v233, 4294967295
        %v282 = vadd.s32 %v234, 4294967295
        %vm283 = vcmp.ge.s32.totalorder %v281, 0
        %vm284 = vcmp.ge.s32.totalorder %v282, 0
        %vm285 = vcmp.lt.s32.totalorder %v281, 16
        %vm286 = vcmp.lt.s32.totalorder %v282, 16
        %vm287 = vmand %vm283, %vm285
        %vm288 = vmand %vm284, %vm286
        %v289 = vsel %vm287, 1.0, 0.0
        %v290 = vsel %vm288, 1.0, 0.0
        %v293 = vrot.slane %v290, 7
        %v294 = vsel %vm257, %v289, %v293
        %s296 = scalar_lea.vmem [#allocation2], 4
        %297 = vst.msk [vmem:[%s296] ss:$8 sm:$0x3] %vm238, %v294
        %298 = vst.msk [vmem:[%s296] ss:$8 sm:$0x0] %vm238, %v294
        %v299 = vadd.s32 %v233, 1
        %v300 = vadd.s32 %v234, 1
        %vm301 = vcmp.ge.s32.totalorder %v299, 0
        %vm302 = vcmp.ge.s32.totalorder %v300, 0
        %vm303 = vcmp.lt.s32.totalorder %v299, 16
        %vm304 = vcmp.lt.s32.totalorder %v300, 16
        %vm305 = vmand %vm301, %vm303
        %vm306 = vmand %vm302, %vm304
        %v307 = vsel %vm305, 1.0, 0.0
        %v308 = vsel %vm306, 1.0, 0.0
        %v311 = vrot.slane %v308, 7
        %v312 = vsel %vm257, %v307, %v311
        %s314 = scalar_lea.vmem [#allocation2], 5
        %315 = vst.msk [vmem:[%s314] ss:$8 sm:$0x3] %vm238, %v312
        %316 = vst.msk [vmem:[%s314] ss:$8 sm:$0x0] %vm238, %v312
        %v317 = vadd.s32 %v233, 2
        %v318 = vadd.s32 %v234, 2
        %vm319 = vcmp.ge.s32.totalorder %v317, 0
        %vm320 = vcmp.ge.s32.totalorder %v318, 0
        %vm321 = vcmp.lt.s32.totalorder %v317, 16
        %vm322 = vcmp.lt.s32.totalorder %v318, 16
        %vm323 = vmand %vm319, %vm321
        %vm324 = vmand %vm320, %vm322
        %v325 = vsel %vm323, 1.0, 0.0
        %v326 = vsel %vm324, 1.0, 0.0
        %v329 = vrot.slane %v326, 7
        %v330 = vsel %vm257, %v325, %v329
        %s332 = scalar_lea.vmem [#allocation2], 6
        %333 = vst.msk [vmem:[%s332] ss:$8 sm:$0x3] %vm238, %v330
        %334 = vst.msk [vmem:[%s332] ss:$8 sm:$0x0] %vm238, %v330
        %v335 = vadd.s32 %v233, 3
        %v336 = vadd.s32 %v234, 3
        %vm337 = vcmp.ge.s32.totalorder %v335, 0
        %vm338 = vcmp.ge.s32.totalorder %v336, 0
        %vm339 = vcmp.lt.s32.totalorder %v335, 16
        %vm340 = vcmp.lt.s32.totalorder %v336, 16
        %vm341 = vmand %vm337, %vm339
        %vm342 = vmand %vm338, %vm340
        %v343 = vsel %vm341, 1.0, 0.0
        %v344 = vsel %vm342, 1.0, 0.0
        %v347 = vrot.slane %v344, 7
        %v348 = vsel %vm257, %v343, %v347
        %s350 = scalar_lea.vmem [#allocation2], 7
        %351 = vst.msk [vmem:[%s350] ss:$8 sm:$0x3] %vm238, %v348
        %352 = vst.msk [vmem:[%s350] ss:$8 sm:$0x0] %vm238, %v348
        %v353 = vld [vmem:[#allocation2] ss:$8 sm:$0x3]
        %s354 = sld [smem:[#allocation4 + $0x3]]
        %v355 = vstv %s354
        %v356 = vmul.f32 %v355, %v353
        %v358 = vperm.slane %v353, 0
        %v359 = vperm.slane %v353, 1
        %362 = vrot.lane.b32.xlu0 %v358, 3
        %v363 = vpop.permute.xlu0 %362
        %364 = vrot.lane.b32.xlu0 %v359, 3
        %v365 = vpop.permute.xlu0 %364
        %vm366 = vcmp.lt.s32.totalorder %v231, 3
        %v367 = vsel %vm366, %v363, %v365
        %v368 = vsel %vm366, %v365, %v363
        %s369 = sld [smem:[#allocation4]]
        %v370 = vld [vmem:[%s260] ss:$8 sm:$0x3]
        %v372 = vperm.slane %v370, 0
        %v373 = vperm.slane %v370, 1
        %v376 = vmul.f32 %v368, %v372
        %v377 = vmul.f32 %v367, %v373
        %v378 = vstv %s369
        %v379 = vmul.f32 %v378, %v376
        %v380 = vmul.f32 %v378, %v377
        %v383 = vrot.slane %v380, 7
        %v384 = vsel %vm257, %v379, %v383
        %v386 = vadd.f32 %v356, %v384
        %387 = vrot.lane.b32.xlu0 %v358, 2
        %v388 = vpop.permute.xlu0 %387
        %389 = vrot.lane.b32.xlu0 %v359, 2
        %v390 = vpop.permute.xlu0 %389
        %vm391 = vcmp.lt.s32.totalorder %v231, 2
        %v392 = vsel %vm391, %v388, %v390
        %v393 = vsel %vm391, %v390, %v388
        %s394 = sld [smem:[#allocation4 + $0x1]]
        %v395 = vld [vmem:[%s278] ss:$8 sm:$0x3]
        %v397 = vperm.slane %v395, 0
        %v398 = vperm.slane %v395, 1
        %v401 = vmul.f32 %v393, %v397
        %v402 = vmul.f32 %v392, %v398
        %v403 = vstv %s394
        %v404 = vmul.f32 %v403, %v401
        %v405 = vmul.f32 %v403, %v402
        %v408 = vrot.slane %v405, 7
        %v409 = vsel %vm257, %v404, %v408
        %v411 = vadd.f32 %v386, %v409
        %412 = vrot.lane.b32.xlu0 %v358, 1
        %v413 = vpop.permute.xlu0 %412
        %414 = vrot.lane.b32.xlu0 %v359, 1
        %v415 = vpop.permute.xlu0 %414
        %vm416 = vcmp.lt.s32.totalorder %v231, 1
        %v417 = vsel %vm416, %v413, %v415
        %v418 = vsel %vm416, %v415, %v413
        %s419 = sld [smem:[#allocation4 + $0x2]]
        %v420 = vld [vmem:[%s296] ss:$8 sm:$0x3]
        %v422 = vperm.slane %v420, 0
        %v423 = vperm.slane %v420, 1
        %v426 = vmul.f32 %v418, %v422
        %v427 = vmul.f32 %v417, %v423
        %v428 = vstv %s419
        %v429 = vmul.f32 %v428, %v426
        %v430 = vmul.f32 %v428, %v427
        %v433 = vrot.slane %v430, 7
        %v434 = vsel %vm257, %v429, %v433
        %v436 = vadd.f32 %v411, %v434
        %437 = vrot.lane.b32.xlu0 %v358, 127
        %v438 = vpop.permute.xlu0 %437
        %439 = vrot.lane.b32.xlu0 %v359, 127
        %v440 = vpop.permute.xlu0 %439
        %vm441 = vcmp.lt.s32.totalorder %v231, 127
        %v442 = vsel %vm441, %v438, %v440
        %v443 = vsel %vm441, %v440, %v438
        %s444 = sld [smem:[#allocation4 + $0x4]]
        %v445 = vld [vmem:[%s314] ss:$8 sm:$0x3]
        %v447 = vperm.slane %v445, 0
        %v448 = vperm.slane %v445, 1
        %v451 = vmul.f32 %v442, %v447
        %v452 = vmul.f32 %v443, %v448
        %v453 = vstv %s444
        %v454 = vmul.f32 %v453, %v451
        %v455 = vmul.f32 %v453, %v452
        %v458 = vrot.slane %v455, 7
        %v459 = vsel %vm257, %v454, %v458
        %v461 = vadd.f32 %v436, %v459
        %462 = vrot.lane.b32.xlu0 %v358, 126
        %v463 = vpop.permute.xlu0 %462
        %464 = vrot.lane.b32.xlu0 %v359, 126
        %v465 = vpop.permute.xlu0 %464
        %vm466 = vcmp.lt.s32.totalorder %v231, 126
        %v467 = vsel %vm466, %v463, %v465
        %v468 = vsel %vm466, %v465, %v463
        %s469 = sld [smem:[#allocation4 + $0x5]]
        %v470 = vld [vmem:[%s332] ss:$8 sm:$0x3]
        %v472 = vperm.slane %v470, 0
        %v473 = vperm.slane %v470, 1
        %v476 = vmul.f32 %v467, %v472
        %v477 = vmul.f32 %v468, %v473
        %v478 = vstv %s469
        %v479 = vmul.f32 %v478, %v476
        %v480 = vmul.f32 %v478, %v477
        %v483 = vrot.slane %v480, 7
        %v484 = vsel %vm257, %v479, %v483
        %v486 = vadd.f32 %v461, %v484
        %487 = vrot.lane.b32.xlu0 %v358, 125
        %v488 = vpop.permute.xlu0 %487
        %489 = vrot.lane.b32.xlu0 %v359, 125
        %v490 = vpop.permute.xlu0 %489
        %vm491 = vcmp.lt.s32.totalorder %v231, 125
        %v492 = vsel %vm491, %v488, %v490
        %v493 = vsel %vm491, %v490, %v488
        %s494 = sld [smem:[#allocation4 + $0x6]]
        %v495 = vld [vmem:[%s350] ss:$8 sm:$0x3]
        %v497 = vperm.slane %v495, 0
        %v498 = vperm.slane %v495, 1
        %v501 = vmul.f32 %v492, %v497
        %v502 = vmul.f32 %v493, %v498
        %v503 = vstv %s494
        %v504 = vmul.f32 %v503, %v501
        %v505 = vmul.f32 %v503, %v502
        %v508 = vrot.slane %v505, 7
        %v509 = vsel %vm257, %v504, %v508
        %v511 = vadd.f32 %v486, %v509
        %v513 = vperm.slane %v511, 0
        %v514 = vperm.slane %v511, 1
        %517 = vrot.lane.b32.xlu0 %v513, 48
        %v518 = vpop.permute.xlu0 %517
        %519 = vrot.lane.b32.xlu0 %v514, 48
        %v520 = vpop.permute.xlu0 %519
        %vm521 = vcmp.lt.s32.totalorder %v231, 48
        %v522 = vsel %vm521, %v518, %v520
        %v523 = vsel %vm521, %v520, %v518
        %vm524 = vcmp.ge.s32.totalorder %v231, 48
        %vm525 = vcmp.ge.s32.totalorder %v232, 48
        %v526 = vsel %vm524, %v523, 0.0
        %v527 = vsel %vm525, %v522, 0.0
        %v528 = vadd.f32 %v526, 0.0
        %v529 = vadd.f32 %v527, 0.0
        %s530 = sld [smem:[#allocation4 + $0xa]]
        %v531 = vstv %s530
        %v532 = vmul.f32 %v531, %v353
        %s533 = sld [smem:[#allocation4 + $0x7]]
        %v534 = vstv %s533
        %v535 = vmul.f32 %v534, %v376
        %v536 = vmul.f32 %v534, %v377
        %v539 = vrot.slane %v536, 7
        %v540 = vsel %vm257, %v535, %v539
        %v542 = vadd.f32 %v532, %v540
        %s543 = sld [smem:[#allocation4 + $0x8]]
        %v544 = vstv %s543
        %v545 = vmul.f32 %v544, %v401
        %v546 = vmul.f32 %v544, %v402
        %v549 = vrot.slane %v546, 7
        %v550 = vsel %vm257, %v545, %v549
        %v552 = vadd.f32 %v542, %v550
        %s553 = sld [smem:[#allocation4 + $0x9]]
        %v554 = vstv %s553
        %v555 = vmul.f32 %v554, %v426
        %v556 = vmul.f32 %v554, %v427
        %v559 = vrot.slane %v556, 7
        %v560 = vsel %vm257, %v555, %v559
        %v562 = vadd.f32 %v552, %v560
        %s563 = sld [smem:[#allocation4 + $0xb]]
        %v564 = vstv %s563
        %v565 = vmul.f32 %v564, %v451
        %v566 = vmul.f32 %v564, %v452
        %v569 = vrot.slane %v566, 7
        %v570 = vsel %vm257, %v565, %v569
        %v572 = vadd.f32 %v562, %v570
        %s573 = sld [smem:[#allocation4 + $0xc]]
        %v574 = vstv %s573
        %v575 = vmul.f32 %v574, %v476
        %v576 = vmul.f32 %v574, %v477
        %v579 = vrot.slane %v576, 7
        %v580 = vsel %vm257, %v575, %v579
        %v582 = vadd.f32 %v572, %v580
        %s583 = sld [smem:[#allocation4 + $0xd]]
        %v584 = vstv %s583
        %v585 = vmul.f32 %v584, %v501
        %v586 = vmul.f32 %v584, %v502
        %v589 = vrot.slane %v586, 7
        %v590 = vsel %vm257, %v585, %v589
        %v592 = vadd.f32 %v582, %v590
        %v594 = vperm.slane %v592, 0
        %v595 = vperm.slane %v592, 1
        %598 = vrot.lane.b32.xlu0 %v594, 32
        %v599 = vpop.permute.xlu0 %598
        %600 = vrot.lane.b32.xlu0 %v595, 32
        %v601 = vpop.permute.xlu0 %600
        %vm602 = vcmp.lt.s32.totalorder %v231, 32
        %v603 = vsel %vm602, %v599, %v601
        %v604 = vsel %vm602, %v601, %v599
        %vm605 = vcmp.ge.s32.totalorder %v231, 32
        %vm606 = vcmp.ge.s32.totalorder %v232, 32
        %v607 = vsel %vm605, %v604, 0.0
        %v608 = vsel %vm606, %v603, 0.0
        %v609 = vadd.f32 %v528, %v607
        %v610 = vadd.f32 %v529, %v608
        %s611 = sld [smem:[#allocation4 + $0x11]]
        %v612 = vstv %s611
        %v613 = vmul.f32 %v612, %v353
        %s614 = sld [smem:[#allocation4 + $0xe]]
        %v615 = vstv %s614
        %v616 = vmul.f32 %v615, %v376
        %v617 = vmul.f32 %v615, %v377
        %v620 = vrot.slane %v617, 7
        %v621 = vsel %vm257, %v616, %v620
        %v623 = vadd.f32 %v613, %v621
        %s624 = sld [smem:[#allocation4 + $0xf]]
        %v625 = vstv %s624
        %v626 = vmul.f32 %v625, %v401
        %v627 = vmul.f32 %v625, %v402
        %v630 = vrot.slane %v627, 7
        %v631 = vsel %vm257, %v626, %v630
        %v633 = vadd.f32 %v623, %v631
        %s634 = sld [smem:[#allocation4 + $0x10]]
        %v635 = vstv %s634
        %v636 = vmul.f32 %v635, %v426
        %v637 = vmul.f32 %v635, %v427
        %v640 = vrot.slane %v637, 7
        %v641 = vsel %vm257, %v636, %v640
        %v643 = vadd.f32 %v633, %v641
        %s644 = sld [smem:[#allocation4 + $0x12]]
        %v645 = vstv %s644
        %v646 = vmul.f32 %v645, %v451
        %v647 = vmul.f32 %v645, %v452
        %v650 = vrot.slane %v647, 7
        %v651 = vsel %vm257, %v646, %v650
        %v653 = vadd.f32 %v643, %v651
        %s654 = sld [smem:[#allocation4 + $0x13]]
        %v655 = vstv %s654
        %v656 = vmul.f32 %v655, %v476
        %v657 = vmul.f32 %v655, %v477
        %v660 = vrot.slane %v657, 7
        %v661 = vsel %vm257, %v656, %v660
        %v663 = vadd.f32 %v653, %v661
        %s664 = sld [smem:[#allocation4 + $0x14]]
        %v665 = vstv %s664
        %v666 = vmul.f32 %v665, %v501
        %v667 = vmul.f32 %v665, %v502
        %v670 = vrot.slane %v667, 7
        %v671 = vsel %vm257, %v666, %v670
        %v673 = vadd.f32 %v663, %v671
        %v675 = vperm.slane %v673, 0
        %v676 = vperm.slane %v673, 1
        %679 = vrot.lane.b32.xlu0 %v675, 16
        %v680 = vpop.permute.xlu0 %679
        %681 = vrot.lane.b32.xlu0 %v676, 16
        %v682 = vpop.permute.xlu0 %681
        %vm683 = vcmp.lt.s32.totalorder %v231, 16
        %v684 = vsel %vm683, %v680, %v682
        %v685 = vsel %vm683, %v682, %v680
        %vm686 = vcmp.ge.s32.totalorder %v231, 16
        %vm687 = vcmp.ge.s32.totalorder %v232, 16
        %v688 = vsel %vm686, %v685, 0.0
        %v689 = vsel %vm687, %v684, 0.0
        %v690 = vadd.f32 %v609, %v688
        %v691 = vadd.f32 %v610, %v689
        %s692 = sld [smem:[#allocation4 + $0x18]]
        %v693 = vstv %s692
        %v694 = vmul.f32 %v693, %v353
        %s695 = sld [smem:[#allocation4 + $0x15]]
        %v696 = vstv %s695
        %v697 = vmul.f32 %v696, %v376
        %v698 = vmul.f32 %v696, %v377
        %v701 = vrot.slane %v698, 7
        %v702 = vsel %vm257, %v697, %v701
        %v704 = vadd.f32 %v694, %v702
        %s705 = sld [smem:[#allocation4 + $0x16]]
        %v706 = vstv %s705
        %v707 = vmul.f32 %v706, %v401
        %v708 = vmul.f32 %v706, %v402
        %v711 = vrot.slane %v708, 7
        %v712 = vsel %vm257, %v707, %v711
        %v714 = vadd.f32 %v704, %v712
        %s715 = sld [smem:[#allocation4 + $0x17]]
        %v716 = vstv %s715
        %v717 = vmul.f32 %v716, %v426
        %v718 = vmul.f32 %v716, %v427
        %v721 = vrot.slane %v718, 7
        %v722 = vsel %vm257, %v717, %v721
        %v724 = vadd.f32 %v714, %v722
        %s725 = sld [smem:[#allocation4 + $0x19]]
        %v726 = vstv %s725
        %v727 = vmul.f32 %v726, %v451
        %v728 = vmul.f32 %v726, %v452
        %v731 = vrot.slane %v728, 7
        %v732 = vsel %vm257, %v727, %v731
        %v734 = vadd.f32 %v724, %v732
        %s735 = sld [smem:[#allocation4 + $0x1a]]
        %v736 = vstv %s735
        %v737 = vmul.f32 %v736, %v476
        %v738 = vmul.f32 %v736, %v477
        %v741 = vrot.slane %v738, 7
        %v742 = vsel %vm257, %v737, %v741
        %v744 = vadd.f32 %v734, %v742
        %s745 = sld [smem:[#allocation4 + $0x1b]]
        %v746 = vstv %s745
        %v747 = vmul.f32 %v746, %v501
        %v748 = vmul.f32 %v746, %v502
        %v751 = vrot.slane %v748, 7
        %v752 = vsel %vm257, %v747, %v751
        %v754 = vadd.f32 %v744, %v752
        %v756 = vperm.slane %v754, 0
        %v757 = vperm.slane %v754, 1
        %v760 = vadd.f32 %v690, %v756
        %v761 = vadd.f32 %v691, %v757
        %s762 = sld [smem:[#allocation4 + $0x1f]]
        %v763 = vstv %s762
        %v764 = vmul.f32 %v763, %v353
        %s765 = sld [smem:[#allocation4 + $0x1c]]
        %v766 = vstv %s765
        %v767 = vmul.f32 %v766, %v376
        %v768 = vmul.f32 %v766, %v377
        %v771 = vrot.slane %v768, 7
        %v772 = vsel %vm257, %v767, %v771
        %v774 = vadd.f32 %v764, %v772
        %s775 = sld [smem:[#allocation4 + $0x1d]]
        %v776 = vstv %s775
        %v777 = vmul.f32 %v776, %v401
        %v778 = vmul.f32 %v776, %v402
        %v781 = vrot.slane %v778, 7
        %v782 = vsel %vm257, %v777, %v781
        %v784 = vadd.f32 %v774, %v782
        %s785 = sld [smem:[#allocation4 + $0x1e]]
        %v786 = vstv %s785
        %v787 = vmul.f32 %v786, %v426
        %v788 = vmul.f32 %v786, %v427
        %v791 = vrot.slane %v788, 7
        %v792 = vsel %vm257, %v787, %v791
        %v794 = vadd.f32 %v784, %v792
        %s795 = sld [smem:[#allocation4 + $0x20]]
        %v796 = vstv %s795
        %v797 = vmul.f32 %v796, %v451
        %v798 = vmul.f32 %v796, %v452
        %v801 = vrot.slane %v798, 7
        %v802 = vsel %vm257, %v797, %v801
        %v804 = vadd.f32 %v794, %v802
        %s805 = sld [smem:[#allocation4 + $0x21]]
        %v806 = vstv %s805
        %v807 = vmul.f32 %v806, %v476
        %v808 = vmul.f32 %v806, %v477
        %v811 = vrot.slane %v808, 7
        %v812 = vsel %vm257, %v807, %v811
        %v814 = vadd.f32 %v804, %v812
        %s815 = sld [smem:[#allocation4 + $0x22]]
        %v816 = vstv %s815
        %v817 = vmul.f32 %v816, %v501
        %v818 = vmul.f32 %v816, %v502
        %v821 = vrot.slane %v818, 7
        %v822 = vsel %vm257, %v817, %v821
        %v824 = vadd.f32 %v814, %v822
        %v826 = vperm.slane %v824, 0
        %v827 = vperm.slane %v824, 1
        %830 = vrot.lane.b32.xlu0 %v826, 112
        %v831 = vpop.permute.xlu0 %830
        %832 = vrot.lane.b32.xlu0 %v827, 112
        %v833 = vpop.permute.xlu0 %832
        %vm834 = vcmp.lt.s32.totalorder %v231, 112
        %v835 = vsel %vm834, %v831, %v833
        %v836 = vsel %vm834, %v833, %v831
        %vm837 = vcmp.lt.s32.totalorder %v231, 240
        %vm838 = vcmp.lt.s32.totalorder %v232, 240
        %v839 = vsel %vm837, %v835, 0.0
        %v840 = vsel %vm838, %v836, 0.0
        %v841 = vadd.f32 %v760, %v839
        %v842 = vadd.f32 %v761, %v840
        %s843 = sld [smem:[#allocation4 + $0x26]]
        %v844 = vstv %s843
        %v845 = vmul.f32 %v844, %v353
        %s846 = sld [smem:[#allocation4 + $0x23]]
        %v847 = vstv %s846
        %v848 = vmul.f32 %v847, %v376
        %v849 = vmul.f32 %v847, %v377
        %v852 = vrot.slane %v849, 7
        %v853 = vsel %vm257, %v848, %v852
        %v855 = vadd.f32 %v845, %v853
        %s856 = sld [smem:[#allocation4 + $0x24]]
        %v857 = vstv %s856
        %v858 = vmul.f32 %v857, %v401
        %v859 = vmul.f32 %v857, %v402
        %v862 = vrot.slane %v859, 7
        %v863 = vsel %vm257, %v858, %v862
        %v865 = vadd.f32 %v855, %v863
        %s866 = sld [smem:[#allocation4 + $0x25]]
        %v867 = vstv %s866
        %v868 = vmul.f32 %v867, %v426
        %v869 = vmul.f32 %v867, %v427
        %v872 = vrot.slane %v869, 7
        %v873 = vsel %vm257, %v868, %v872
        %v875 = vadd.f32 %v865, %v873
        %s876 = sld [smem:[#allocation4 + $0x27]]
        %v877 = vstv %s876
        %v878 = vmul.f32 %v877, %v451
        %v879 = vmul.f32 %v877, %v452
        %v882 = vrot.slane %v879, 7
        %v883 = vsel %vm257, %v878, %v882
        %v885 = vadd.f32 %v875, %v883
        %s886 = sld [smem:[#allocation4 + $0x28]]
        %v887 = vstv %s886
        %v888 = vmul.f32 %v887, %v476
        %v889 = vmul.f32 %v887, %v477
        %v892 = vrot.slane %v889, 7
        %v893 = vsel %vm257, %v888, %v892
        %v895 = vadd.f32 %v885, %v893
        %s896 = sld [smem:[#allocation4 + $0x29]]
        %v897 = vstv %s896
        %v898 = vmul.f32 %v897, %v501
        %v899 = vmul.f32 %v897, %v502
        %v902 = vrot.slane %v899, 7
        %v903 = vsel %vm257, %v898, %v902
        %v905 = vadd.f32 %v895, %v903
        %v907 = vperm.slane %v905, 0
        %v908 = vperm.slane %v905, 1
        %911 = vrot.lane.b32.xlu0 %v907, 96
        %v912 = vpop.permute.xlu0 %911
        %913 = vrot.lane.b32.xlu0 %v908, 96
        %v914 = vpop.permute.xlu0 %913
        %vm915 = vcmp.lt.s32.totalorder %v231, 96
        %v916 = vsel %vm915, %v912, %v914
        %v917 = vsel %vm915, %v914, %v912
        %vm918 = vcmp.lt.s32.totalorder %v231, 224
        %vm919 = vcmp.lt.s32.totalorder %v232, 224
        %v920 = vsel %vm918, %v916, 0.0
        %v921 = vsel %vm919, %v917, 0.0
        %v922 = vadd.f32 %v841, %v920
        %v923 = vadd.f32 %v842, %v921
        %s924 = sld [smem:[#allocation4 + $0x2d]]
        %v925 = vstv %s924
        %v926 = vmul.f32 %v925, %v353
        %s927 = sld [smem:[#allocation4 + $0x2a]]
        %v928 = vstv %s927
        %v929 = vmul.f32 %v928, %v376
        %v930 = vmul.f32 %v928, %v377
        %v933 = vrot.slane %v930, 7
        %v934 = vsel %vm257, %v929, %v933
        %v936 = vadd.f32 %v926, %v934
        %s937 = sld [smem:[#allocation4 + $0x2b]]
        %v938 = vstv %s937
        %v939 = vmul.f32 %v938, %v401
        %v940 = vmul.f32 %v938, %v402
        %v943 = vrot.slane %v940, 7
        %v944 = vsel %vm257, %v939, %v943
        %v946 = vadd.f32 %v936, %v944
        %s947 = sld [smem:[#allocation4 + $0x2c]]
        %v948 = vstv %s947
        %v949 = vmul.f32 %v948, %v426
        %v950 = vmul.f32 %v948, %v427
        %v953 = vrot.slane %v950, 7
        %v954 = vsel %vm257, %v949, %v953
        %v956 = vadd.f32 %v946, %v954
        %s957 = sld [smem:[#allocation4 + $0x2e]]
        %v958 = vstv %s957
        %v959 = vmul.f32 %v958, %v451
        %v960 = vmul.f32 %v958, %v452
        %v963 = vrot.slane %v960, 7
        %v964 = vsel %vm257, %v959, %v963
        %v966 = vadd.f32 %v956, %v964
        %s967 = sld [smem:[#allocation4 + $0x2f]]
        %v968 = vstv %s967
        %v969 = vmul.f32 %v968, %v476
        %v970 = vmul.f32 %v968, %v477
        %v973 = vrot.slane %v970, 7
        %v974 = vsel %vm257, %v969, %v973
        %v976 = vadd.f32 %v966, %v974
        %s977 = sld [smem:[#allocation4 + $0x30]]
        %v978 = vstv %s977
        %v979 = vmul.f32 %v978, %v501
        %v980 = vmul.f32 %v978, %v502
        %v983 = vrot.slane %v980, 7
        %v984 = vsel %vm257, %v979, %v983
        %v986 = vadd.f32 %v976, %v984
        %v988 = vperm.slane %v986, 0
        %v989 = vperm.slane %v986, 1
        %992 = vrot.lane.b32.xlu0 %v988, 80
        %v993 = vpop.permute.xlu0 %992
        %994 = vrot.lane.b32.xlu0 %v989, 80
        %v995 = vpop.permute.xlu0 %994
        %vm996 = vcmp.lt.s32.totalorder %v231, 80
        %v997 = vsel %vm996, %v993, %v995
        %v998 = vsel %vm996, %v995, %v993
        %vm999 = vcmp.lt.s32.totalorder %v231, 208
        %vm1000 = vcmp.lt.s32.totalorder %v232, 208
        %v1001 = vsel %vm999, %v997, 0.0
        %v1002 = vsel %vm1000, %v998, 0.0
        %v1003 = vadd.f32 %v922, %v1001
        %v1004 = vadd.f32 %v923, %v1002
        %v1005 = vld [vmem:[%s241] ss:$8 sm:$0x3]
        %s1006 = sld [smem:[#allocation4 + $0x34]]
        %v1007 = vstv %s1006
        %v1008 = vmul.f32 %v1007, %v1005
        %v1010 = vperm.slane %v1005, 0
        %v1011 = vperm.slane %v1005, 1
        %1014 = vrot.lane.b32.xlu0 %v1010, 3
        %v1015 = vpop.permute.xlu0 %1014
        %1016 = vrot.lane.b32.xlu0 %v1011, 3
        %v1017 = vpop.permute.xlu0 %1016
        %v1018 = vsel %vm366, %v1015, %v1017
        %v1019 = vsel %vm366, %v1017, %v1015
        %s1020 = sld [smem:[#allocation4 + $0x31]]
        %v1021 = vmul.f32 %v1019, %v372
        %v1022 = vmul.f32 %v1018, %v373
        %v1023 = vstv %s1020
        %v1024 = vmul.f32 %v1023, %v1021
        %v1025 = vmul.f32 %v1023, %v1022
        %v1028 = vrot.slane %v1025, 7
        %v1029 = vsel %vm257, %v1024, %v1028
        %v1031 = vadd.f32 %v1008, %v1029
        %1032 = vrot.lane.b32.xlu0 %v1010, 2
        %v1033 = vpop.permute.xlu0 %1032
        %1034 = vrot.lane.b32.xlu0 %v1011, 2
        %v1035 = vpop.permute.xlu0 %1034
        %v1036 = vsel %vm391, %v1033, %v1035
        %v1037 = vsel %vm391, %v1035, %v1033
        %s1038 = sld [smem:[#allocation4 + $0x32]]
        %v1039 = vmul.f32 %v1037, %v397
        %v1040 = vmul.f32 %v1036, %v398
        %v1041 = vstv %s1038
        %v1042 = vmul.f32 %v1041, %v1039
        %v1043 = vmul.f32 %v1041, %v1040
        %v1046 = vrot.slane %v1043, 7
        %v1047 = vsel %vm257, %v1042, %v1046
        %v1049 = vadd.f32 %v1031, %v1047
        %1050 = vrot.lane.b32.xlu0 %v1010, 1
        %v1051 = vpop.permute.xlu0 %1050
        %1052 = vrot.lane.b32.xlu0 %v1011, 1
        %v1053 = vpop.permute.xlu0 %1052
        %v1054 = vsel %vm416, %v1051, %v1053
        %v1055 = vsel %vm416, %v1053, %v1051
        %s1056 = sld [smem:[#allocation4 + $0x33]]
        %v1057 = vmul.f32 %v1055, %v422
        %v1058 = vmul.f32 %v1054, %v423
        %v1059 = vstv %s1056
        %v1060 = vmul.f32 %v1059, %v1057
        %v1061 = vmul.f32 %v1059, %v1058
        %v1064 = vrot.slane %v1061, 7
        %v1065 = vsel %vm257, %v1060, %v1064
        %v1067 = vadd.f32 %v1049, %v1065
        %1068 = vrot.lane.b32.xlu0 %v1010, 127
        %v1069 = vpop.permute.xlu0 %1068
        %1070 = vrot.lane.b32.xlu0 %v1011, 127
        %v1071 = vpop.permute.xlu0 %1070
        %v1072 = vsel %vm441, %v1069, %v1071
        %v1073 = vsel %vm441, %v1071, %v1069
        %s1074 = sld [smem:[#allocation4 + $0x35]]
        %v1075 = vmul.f32 %v1072, %v447
        %v1076 = vmul.f32 %v1073, %v448
        %v1077 = vstv %s1074
        %v1078 = vmul.f32 %v1077, %v1075
        %v1079 = vmul.f32 %v1077, %v1076
        %v1082 = vrot.slane %v1079, 7
        %v1083 = vsel %vm257, %v1078, %v1082
        %v1085 = vadd.f32 %v1067, %v1083
        %1086 = vrot.lane.b32.xlu0 %v1010, 126
        %v1087 = vpop.permute.xlu0 %1086
        %1088 = vrot.lane.b32.xlu0 %v1011, 126
        %v1089 = vpop.permute.xlu0 %1088
        %v1090 = vsel %vm466, %v1087, %v1089
        %v1091 = vsel %vm466, %v1089, %v1087
        %s1092 = sld [smem:[#allocation4 + $0x36]]
        %v1093 = vmul.f32 %v1090, %v472
        %v1094 = vmul.f32 %v1091, %v473
        %v1095 = vstv %s1092
        %v1096 = vmul.f32 %v1095, %v1093
        %v1097 = vmul.f32 %v1095, %v1094
        %v1100 = vrot.slane %v1097, 7
        %v1101 = vsel %vm257, %v1096, %v1100
        %v1103 = vadd.f32 %v1085, %v1101
        %1104 = vrot.lane.b32.xlu0 %v1010, 125
        %v1105 = vpop.permute.xlu0 %1104
        %1106 = vrot.lane.b32.xlu0 %v1011, 125
        %v1107 = vpop.permute.xlu0 %1106
        %v1108 = vsel %vm491, %v1105, %v1107
        %v1109 = vsel %vm491, %v1107, %v1105
        %s1110 = sld [smem:[#allocation4 + $0x37]]
        %v1111 = vmul.f32 %v1108, %v497
        %v1112 = vmul.f32 %v1109, %v498
        %v1113 = vstv %s1110
        %v1114 = vmul.f32 %v1113, %v1111
        %v1115 = vmul.f32 %v1113, %v1112
        %v1118 = vrot.slane %v1115, 7
        %v1119 = vsel %vm257, %v1114, %v1118
        %v1121 = vadd.f32 %v1103, %v1119
        %v1123 = vperm.slane %v1121, 0
        %v1124 = vperm.slane %v1121, 1
        %1127 = vrot.lane.b32.xlu0 %v1123, 48
        %v1128 = vpop.permute.xlu0 %1127
        %1129 = vrot.lane.b32.xlu0 %v1124, 48
        %v1130 = vpop.permute.xlu0 %1129
        %v1131 = vsel %vm521, %v1128, %v1130
        %v1132 = vsel %vm521, %v1130, %v1128
        %v1133 = vsel %vm524, %v1132, 0.0
        %v1134 = vsel %vm525, %v1131, 0.0
        %v1135 = vadd.f32 %v1003, %v1133
        %v1136 = vadd.f32 %v1004, %v1134
        %s1137 = sld [smem:[#allocation4 + $0x3b]]
        %v1138 = vstv %s1137
        %v1139 = vmul.f32 %v1138, %v1005
        %s1140 = sld [smem:[#allocation4 + $0x38]]
        %v1141 = vstv %s1140
        %v1142 = vmul.f32 %v1141, %v1021
        %v1143 = vmul.f32 %v1141, %v1022
        %v1146 = vrot.slane %v1143, 7
        %v1147 = vsel %vm257, %v1142, %v1146
        %v1149 = vadd.f32 %v1139, %v1147
        %s1150 = sld [smem:[#allocation4 + $0x39]]
        %v1151 = vstv %s1150
        %v1152 = vmul.f32 %v1151, %v1039
        %v1153 = vmul.f32 %v1151, %v1040
        %v1156 = vrot.slane %v1153, 7
        %v1157 = vsel %vm257, %v1152, %v1156
        %v1159 = vadd.f32 %v1149, %v1157
        %s1160 = sld [smem:[#allocation4 + $0x3a]]
        %v1161 = vstv %s1160
        %v1162 = vmul.f32 %v1161, %v1057
        %v1163 = vmul.f32 %v1161, %v1058
        %v1166 = vrot.slane %v1163, 7
        %v1167 = vsel %vm257, %v1162, %v1166
        %v1169 = vadd.f32 %v1159, %v1167
        %s1170 = sld [smem:[#allocation4 + $0x3c]]
        %v1171 = vstv %s1170
        %v1172 = vmul.f32 %v1171, %v1075
        %v1173 = vmul.f32 %v1171, %v1076
        %v1176 = vrot.slane %v1173, 7
        %v1177 = vsel %vm257, %v1172, %v1176
        %v1179 = vadd.f32 %v1169, %v1177
        %s1180 = sld [smem:[#allocation4 + $0x3d]]
        %v1181 = vstv %s1180
        %v1182 = vmul.f32 %v1181, %v1093
        %v1183 = vmul.f32 %v1181, %v1094
        %v1186 = vrot.slane %v1183, 7
        %v1187 = vsel %vm257, %v1182, %v1186
        %v1189 = vadd.f32 %v1179, %v1187
        %s1190 = sld [smem:[#allocation4 + $0x3e]]
        %v1191 = vstv %s1190
        %v1192 = vmul.f32 %v1191, %v1111
        %v1193 = vmul.f32 %v1191, %v1112
        %v1196 = vrot.slane %v1193, 7
        %v1197 = vsel %vm257, %v1192, %v1196
        %v1199 = vadd.f32 %v1189, %v1197
        %v1201 = vperm.slane %v1199, 0
        %v1202 = vperm.slane %v1199, 1
        %1205 = vrot.lane.b32.xlu0 %v1201, 32
        %v1206 = vpop.permute.xlu0 %1205
        %1207 = vrot.lane.b32.xlu0 %v1202, 32
        %v1208 = vpop.permute.xlu0 %1207
        %v1209 = vsel %vm602, %v1206, %v1208
        %v1210 = vsel %vm602, %v1208, %v1206
        %v1211 = vsel %vm605, %v1210, 0.0
        %v1212 = vsel %vm606, %v1209, 0.0
        %v1213 = vadd.f32 %v1135, %v1211
        %v1214 = vadd.f32 %v1136, %v1212
        %s1215 = sld [smem:[#allocation4 + $0x42]]
        %v1216 = vstv %s1215
        %v1217 = vmul.f32 %v1216, %v1005
        %s1218 = sld [smem:[#allocation4 + $0x3f]]
        %v1219 = vstv %s1218
        %v1220 = vmul.f32 %v1219, %v1021
        %v1221 = vmul.f32 %v1219, %v1022
        %v1224 = vrot.slane %v1221, 7
        %v1225 = vsel %vm257, %v1220, %v1224
        %v1227 = vadd.f32 %v1217, %v1225
        %s1228 = sld [smem:[#allocation4 + $0x40]]
        %v1229 = vstv %s1228
        %v1230 = vmul.f32 %v1229, %v1039
        %v1231 = vmul.f32 %v1229, %v1040
        %v1234 = vrot.slane %v1231, 7
        %v1235 = vsel %vm257, %v1230, %v1234
        %v1237 = vadd.f32 %v1227, %v1235
        %s1238 = sld [smem:[#allocation4 + $0x41]]
        %v1239 = vstv %s1238
        %v1240 = vmul.f32 %v1239, %v1057
        %v1241 = vmul.f32 %v1239, %v1058
        %v1244 = vrot.slane %v1241, 7
        %v1245 = vsel %vm257, %v1240, %v1244
        %v1247 = vadd.f32 %v1237, %v1245
        %s1248 = sld [smem:[#allocation4 + $0x43]]
        %v1249 = vstv %s1248
        %v1250 = vmul.f32 %v1249, %v1075
        %v1251 = vmul.f32 %v1249, %v1076
        %v1254 = vrot.slane %v1251, 7
        %v1255 = vsel %vm257, %v1250, %v1254
        %v1257 = vadd.f32 %v1247, %v1255
        %s1258 = sld [smem:[#allocation4 + $0x44]]
        %v1259 = vstv %s1258
        %v1260 = vmul.f32 %v1259, %v1093
        %v1261 = vmul.f32 %v1259, %v1094
        %v1264 = vrot.slane %v1261, 7
        %v1265 = vsel %vm257, %v1260, %v1264
        %v1267 = vadd.f32 %v1257, %v1265
        %s1268 = sld [smem:[#allocation4 + $0x45]]
        %v1269 = vstv %s1268
        %v1270 = vmul.f32 %v1269, %v1111
        %v1271 = vmul.f32 %v1269, %v1112
        %v1274 = vrot.slane %v1271, 7
        %v1275 = vsel %vm257, %v1270, %v1274
        %v1277 = vadd.f32 %v1267, %v1275
        %v1279 = vperm.slane %v1277, 0
        %v1280 = vperm.slane %v1277, 1
        %1283 = vrot.lane.b32.xlu0 %v1279, 16
        %v1284 = vpop.permute.xlu0 %1283
        %1285 = vrot.lane.b32.xlu0 %v1280, 16
        %v1286 = vpop.permute.xlu0 %1285
        %v1287 = vsel %vm683, %v1284, %v1286
        %v1288 = vsel %vm683, %v1286, %v1284
        %v1289 = vsel %vm686, %v1288, 0.0
        %v1290 = vsel %vm687, %v1287, 0.0
        %v1291 = vadd.f32 %v1213, %v1289
        %v1292 = vadd.f32 %v1214, %v1290
        %s1293 = sld [smem:[#allocation4 + $0x49]]
        %v1294 = vstv %s1293
        %v1295 = vmul.f32 %v1294, %v1005
        %s1296 = sld [smem:[#allocation4 + $0x46]]
        %v1297 = vstv %s1296
        %v1298 = vmul.f32 %v1297, %v1021
        %v1299 = vmul.f32 %v1297, %v1022
        %v1302 = vrot.slane %v1299, 7
        %v1303 = vsel %vm257, %v1298, %v1302
        %v1305 = vadd.f32 %v1295, %v1303
        %s1306 = sld [smem:[#allocation4 + $0x47]]
        %v1307 = vstv %s1306
        %v1308 = vmul.f32 %v1307, %v1039
        %v1309 = vmul.f32 %v1307, %v1040
        %v1312 = vrot.slane %v1309, 7
        %v1313 = vsel %vm257, %v1308, %v1312
        %v1315 = vadd.f32 %v1305, %v1313
        %s1316 = sld [smem:[#allocation4 + $0x48]]
        %v1317 = vstv %s1316
        %v1318 = vmul.f32 %v1317, %v1057
        %v1319 = vmul.f32 %v1317, %v1058
        %v1322 = vrot.slane %v1319, 7
        %v1323 = vsel %vm257, %v1318, %v1322
        %v1325 = vadd.f32 %v1315, %v1323
        %s1326 = sld [smem:[#allocation4 + $0x4a]]
        %v1327 = vstv %s1326
        %v1328 = vmul.f32 %v1327, %v1075
        %v1329 = vmul.f32 %v1327, %v1076
        %v1332 = vrot.slane %v1329, 7
        %v1333 = vsel %vm257, %v1328, %v1332
        %v1335 = vadd.f32 %v1325, %v1333
        %s1336 = sld [smem:[#allocation4 + $0x4b]]
        %v1337 = vstv %s1336
        %v1338 = vmul.f32 %v1337, %v1093
        %v1339 = vmul.f32 %v1337, %v1094
        %v1342 = vrot.slane %v1339, 7
        %v1343 = vsel %vm257, %v1338, %v1342
        %v1345 = vadd.f32 %v1335, %v1343
        %s1346 = sld [smem:[#allocation4 + $0x4c]]
        %v1347 = vstv %s1346
        %v1348 = vmul.f32 %v1347, %v1111
        %v1349 = vmul.f32 %v1347, %v1112
        %v1352 = vrot.slane %v1349, 7
        %v1353 = vsel %vm257, %v1348, %v1352
        %v1355 = vadd.f32 %v1345, %v1353
        %v1357 = vperm.slane %v1355, 0
        %v1358 = vperm.slane %v1355, 1
        %v1361 = vadd.f32 %v1291, %v1357
        %v1362 = vadd.f32 %v1292, %v1358
        %s1363 = sld [smem:[#allocation4 + $0x50]]
        %v1364 = vstv %s1363
        %v1365 = vmul.f32 %v1364, %v1005
        %s1366 = sld [smem:[#allocation4 + $0x4d]]
        %v1367 = vstv %s1366
        %v1368 = vmul.f32 %v1367, %v1021
        %v1369 = vmul.f32 %v1367, %v1022
        %v1372 = vrot.slane %v1369, 7
        %v1373 = vsel %vm257, %v1368, %v1372
        %v1375 = vadd.f32 %v1365, %v1373
        %s1376 = sld [smem:[#allocation4 + $0x4e]]
        %v1377 = vstv %s1376
        %v1378 = vmul.f32 %v1377, %v1039
        %v1379 = vmul.f32 %v1377, %v1040
        %v1382 = vrot.slane %v1379, 7
        %v1383 = vsel %vm257, %v1378, %v1382
        %v1385 = vadd.f32 %v1375, %v1383
        %s1386 = sld [smem:[#allocation4 + $0x4f]]
        %v1387 = vstv %s1386
        %v1388 = vmul.f32 %v1387, %v1057
        %v1389 = vmul.f32 %v1387, %v1058
        %v1392 = vrot.slane %v1389, 7
        %v1393 = vsel %vm257, %v1388, %v1392
        %v1395 = vadd.f32 %v1385, %v1393
        %s1396 = sld [smem:[#allocation4 + $0x51]]
        %v1397 = vstv %s1396
        %v1398 = vmul.f32 %v1397, %v1075
        %v1399 = vmul.f32 %v1397, %v1076
        %v1402 = vrot.slane %v1399, 7
        %v1403 = vsel %vm257, %v1398, %v1402
        %v1405 = vadd.f32 %v1395, %v1403
        %s1406 = sld [smem:[#allocation4 + $0x52]]
        %v1407 = vstv %s1406
        %v1408 = vmul.f32 %v1407, %v1093
        %v1409 = vmul.f32 %v1407, %v1094
        %v1412 = vrot.slane %v1409, 7
        %v1413 = vsel %vm257, %v1408, %v1412
        %v1415 = vadd.f32 %v1405, %v1413
        %s1416 = sld [smem:[#allocation4 + $0x53]]
        %v1417 = vstv %s1416
        %v1418 = vmul.f32 %v1417, %v1111
        %v1419 = vmul.f32 %v1417, %v1112
        %v1422 = vrot.slane %v1419, 7
        %v1423 = vsel %vm257, %v1418, %v1422
        %v1425 = vadd.f32 %v1415, %v1423
        %v1427 = vperm.slane %v1425, 0
        %v1428 = vperm.slane %v1425, 1
        %1431 = vrot.lane.b32.xlu0 %v1427, 112
        %v1432 = vpop.permute.xlu0 %1431
        %1433 = vrot.lane.b32.xlu0 %v1428, 112
        %v1434 = vpop.permute.xlu0 %1433
        %v1435 = vsel %vm834, %v1432, %v1434
        %v1436 = vsel %vm834, %v1434, %v1432
        %v1437 = vsel %vm837, %v1435, 0.0
        %v1438 = vsel %vm838, %v1436, 0.0
        %v1439 = vadd.f32 %v1361, %v1437
        %v1440 = vadd.f32 %v1362, %v1438
        %s1441 = sld [smem:[#allocation4 + $0x57]]
        %v1442 = vstv %s1441
        %v1443 = vmul.f32 %v1442, %v1005
        %s1444 = sld [smem:[#allocation4 + $0x54]]
        %v1445 = vstv %s1444
        %v1446 = vmul.f32 %v1445, %v1021
        %v1447 = vmul.f32 %v1445, %v1022
        %v1450 = vrot.slane %v1447, 7
        %v1451 = vsel %vm257, %v1446, %v1450
        %v1453 = vadd.f32 %v1443, %v1451
        %s1454 = sld [smem:[#allocation4 + $0x55]]
        %v1455 = vstv %s1454
        %v1456 = vmul.f32 %v1455, %v1039
        %v1457 = vmul.f32 %v1455, %v1040
        %v1460 = vrot.slane %v1457, 7
        %v1461 = vsel %vm257, %v1456, %v1460
        %v1463 = vadd.f32 %v1453, %v1461
        %s1464 = sld [smem:[#allocation4 + $0x56]]
        %v1465 = vstv %s1464
        %v1466 = vmul.f32 %v1465, %v1057
        %v1467 = vmul.f32 %v1465, %v1058
        %v1470 = vrot.slane %v1467, 7
        %v1471 = vsel %vm257, %v1466, %v1470
        %v1473 = vadd.f32 %v1463, %v1471
        %s1474 = sld [smem:[#allocation4 + $0x58]]
        %v1475 = vstv %s1474
        %v1476 = vmul.f32 %v1475, %v1075
        %v1477 = vmul.f32 %v1475, %v1076
        %v1480 = vrot.slane %v1477, 7
        %v1481 = vsel %vm257, %v1476, %v1480
        %v1483 = vadd.f32 %v1473, %v1481
        %s1484 = sld [smem:[#allocation4 + $0x59]]
        %v1485 = vstv %s1484
        %v1486 = vmul.f32 %v1485, %v1093
        %v1487 = vmul.f32 %v1485, %v1094
        %v1490 = vrot.slane %v1487, 7
        %v1491 = vsel %vm257, %v1486, %v1490
        %v1493 = vadd.f32 %v1483, %v1491
        %s1494 = sld [smem:[#allocation4 + $0x5a]]
        %v1495 = vstv %s1494
        %v1496 = vmul.f32 %v1495, %v1111
        %v1497 = vmul.f32 %v1495, %v1112
        %v1500 = vrot.slane %v1497, 7
        %v1501 = vsel %vm257, %v1496, %v1500
        %v1503 = vadd.f32 %v1493, %v1501
        %v1505 = vperm.slane %v1503, 0
        %v1506 = vperm.slane %v1503, 1
        %1509 = vrot.lane.b32.xlu0 %v1505, 96
        %v1510 = vpop.permute.xlu0 %1509
        %1511 = vrot.lane.b32.xlu0 %v1506, 96
        %v1512 = vpop.permute.xlu0 %1511
        %v1513 = vsel %vm915, %v1510, %v1512
        %v1514 = vsel %vm915, %v1512, %v1510
        %v1515 = vsel %vm918, %v1513, 0.0
        %v1516 = vsel %vm919, %v1514, 0.0
        %v1517 = vadd.f32 %v1439, %v1515
        %v1518 = vadd.f32 %v1440, %v1516
        %s1519 = sld [smem:[#allocation4 + $0x5e]]
        %v1520 = vstv %s1519
        %v1521 = vmul.f32 %v1520, %v1005
        %s1522 = sld [smem:[#allocation4 + $0x5b]]
        %v1523 = vstv %s1522
        %v1524 = vmul.f32 %v1523, %v1021
        %v1525 = vmul.f32 %v1523, %v1022
        %v1528 = vrot.slane %v1525, 7
        %v1529 = vsel %vm257, %v1524, %v1528
        %v1531 = vadd.f32 %v1521, %v1529
        %s1532 = sld [smem:[#allocation4 + $0x5c]]
        %v1533 = vstv %s1532
        %v1534 = vmul.f32 %v1533, %v1039
        %v1535 = vmul.f32 %v1533, %v1040
        %v1538 = vrot.slane %v1535, 7
        %v1539 = vsel %vm257, %v1534, %v1538
        %v1541 = vadd.f32 %v1531, %v1539
        %s1542 = sld [smem:[#allocation4 + $0x5d]]
        %v1543 = vstv %s1542
        %v1544 = vmul.f32 %v1543, %v1057
        %v1545 = vmul.f32 %v1543, %v1058
        %v1548 = vrot.slane %v1545, 7
        %v1549 = vsel %vm257, %v1544, %v1548
        %v1551 = vadd.f32 %v1541, %v1549
        %s1552 = sld [smem:[#allocation4 + $0x5f]]
        %v1553 = vstv %s1552
        %v1554 = vmul.f32 %v1553, %v1075
        %v1555 = vmul.f32 %v1553, %v1076
        %v1558 = vrot.slane %v1555, 7
        %v1559 = vsel %vm257, %v1554, %v1558
        %v1561 = vadd.f32 %v1551, %v1559
        %s1562 = sld [smem:[#allocation4 + $0x60]]
        %v1563 = vstv %s1562
        %v1564 = vmul.f32 %v1563, %v1093
        %v1565 = vmul.f32 %v1563, %v1094
        %v1568 = vrot.slane %v1565, 7
        %v1569 = vsel %vm257, %v1564, %v1568
        %v1571 = vadd.f32 %v1561, %v1569
        %s1572 = sld [smem:[#allocation4 + $0x61]]
        %v1573 = vstv %s1572
        %v1574 = vmul.f32 %v1573, %v1111
        %v1575 = vmul.f32 %v1573, %v1112
        %v1578 = vrot.slane %v1575, 7
        %v1579 = vsel %vm257, %v1574, %v1578
        %v1581 = vadd.f32 %v1571, %v1579
        %v1583 = vperm.slane %v1581, 0
        %v1584 = vperm.slane %v1581, 1
        %1587 = vrot.lane.b32.xlu0 %v1583, 80
        %v1588 = vpop.permute.xlu0 %1587
        %1589 = vrot.lane.b32.xlu0 %v1584, 80
        %v1590 = vpop.permute.xlu0 %1589
        %v1591 = vsel %vm996, %v1588, %v1590
        %v1592 = vsel %vm996, %v1590, %v1588
        %v1593 = vsel %vm999, %v1591, 0.0
        %v1594 = vsel %vm1000, %v1592, 0.0
        %v1595 = vadd.f32 %v1517, %v1593
        %v1596 = vadd.f32 %v1518, %v1594
        %s1597 = sld [smem:[#allocation8]]
        %v1598 = vstv %s1597
        %v1599 = vmul.f32 %v1595, %v1598
        %v1600 = vmul.f32 %v1596, %v1598
        %s1601 = sld [smem:[#allocation8 + $0x1]]
        %v1602 = vstv %s1601
        %v1603 = vadd.f32 %v1599, %v1602
        %v1604 = vadd.f32 %v1600, %v1602
        %v1605 = vxor.u32 %v1603, 2147483648
        %v1606 = vxor.u32 %v1604, 2147483648
        %v1607 = vmul.f32 %v1605, 1.442695
        %v1608 = vpow.pop %v1607
        %v1609 = vmul.f32 %v1606, 1.442695
        %v1610 = vpow.pop %v1609
        %v1611 = vadd.f32 %v1608, 1.0
        %v1612 = vadd.f32 %v1610, 1.0
        %v1613 = vrcp.pop %v1611
        %v1614 = vmul.f32 %v1611, %v1613
        %v1615 = vsub.f32 1.0, %v1614
        %v1616 = vmul.f32 %v1613, %v1615
        %v1617 = vadd.f32 %v1613, %v1616
        %vm1618 = vweird.f32 %v1611
        %vm1619 = vweird.f32 %v1613
        %vm1620 = vmor %vm1618, %vm1619
        %v1621 = vsel %vm1620, %v1613, %v1617
        %v1622 = vand.u32 2147483647, %v1611
        %vm1623 = vcmp.eq.f32.partialorder %v1622, 8.507059e+37
        %v1624 = vand.u32 %v1611, 2147483648
        %v1625 = vor.u32 1.1754944e-38, %v1624
        %v1626 = vsel %vm1623, %v1625, %v1621
        %v1627 = vmul.f32 1.0, %v1626
        %v1628 = vrcp.pop %v1612
        %v1629 = vmul.f32 %v1612, %v1628
        %v1630 = vsub.f32 1.0, %v1629
        %v1631 = vmul.f32 %v1628, %v1630
        %v1632 = vadd.f32 %v1628, %v1631
        %vm1633 = vweird.f32 %v1612
        %vm1634 = vweird.f32 %v1628
        %vm1635 = vmor %vm1633, %vm1634
        %v1636 = vsel %vm1635, %v1628, %v1632
        %v1637 = vand.u32 2147483647, %v1612
        %vm1638 = vcmp.eq.f32.partialorder %v1637, 8.507059e+37
        %v1639 = vand.u32 %v1612, 2147483648
        %v1640 = vor.u32 1.1754944e-38, %v1639
        %v1641 = vsel %vm1638, %v1640, %v1636
        %v1642 = vmul.f32 1.0, %v1641
        %v1643 = vperm.slane %v1627, 0
        %v1644 = vperm.slane %v1642, 0
        %1645 = vst [vmem:[#allocation3] sm:$0xff] %v1643
        %1646 = vst [vmem:[#allocation3 + $0x8] sm:$0xff] %v1644
        %v1647 = vld [vmem:[%s191] ss:$4 sm:$0x3]
        %v1648 = vld [vmem:[#allocation3] ss:$8 sm:$0x3]
        %v1649 = vmul.f32 %v1647, %v1648
        %1650 = vst.msk [vmem:[%s215] ss:$4 sm:$0x3] %vm238, %v1649
        %v1651 = vld [vmem:[%s217] ss:$4 sm:$0x3]
        %v1652 = vld [vmem:[#allocation3] ss:$8 sm:$0x3]
        %v1653 = vmul.f32 %v1651, %v1652
        %s1654 = scalar_lea.vmem %s215, 1 [#allocation11]
        %1655 = vst.msk [vmem:[%s1654] ss:$4 sm:$0x3] %vm238, %v1653
        %v1656 = vld [vmem:[%s221] ss:$4 sm:$0x3]
        %v1657 = vld [vmem:[#allocation3] ss:$8 sm:$0x3]
        %v1658 = vmul.f32 %v1656, %v1657
        %s1659 = scalar_lea.vmem %s215, 2 [#allocation11]
        %1660 = vst.msk [vmem:[%s1659] ss:$4 sm:$0x3] %vm238, %v1658
        %v1661 = vld [vmem:[%s225] ss:$4 sm:$0x3]
        %v1662 = vld [vmem:[#allocation3] ss:$8 sm:$0x3]
        %v1663 = vmul.f32 %v1661, %v1662
        %s1664 = scalar_lea.vmem %s215, 3 [#allocation11]
        %1665 = vst.msk [vmem:[%s1664] ss:$4 sm:$0x3] %vm238, %v1663
        %s1666 = sand.u32 %s98, 1
        %s1667 = scalar_lea.sflag [#allocation6], %s1666
        %s1668 = sand.u32 %s98, 1
        %s1669 = smul.addr %s1668, 8
        %s1670 = scalar_lea.vmem [#allocation11], %s1669
        // Predicated region
        $region45: #{tpu_custom_call.1} parent=31 // pred_check
          %p1671 = pneg %p108
        $region46: #{tpu_custom_call.1} parent=31 // pred_check_branch
          %1673 = sbr.rel (%p1671) target = $region48
        $region47: #{tpu_custom_call.1} parent=31 // pred_region
          %1675 = vsyncadd %s1667, 0
          %s1676 = smul.addr %s22, 2
          %s1677 = smul.addr %s1676, 4
          %s1678 = scalar_lea.hbm %s3, %s1677
          %s1680 = sshll.u32 %s1670, 4
          %s1681 = int_to_ptr.vmem [resolvable:$true] %s1680
          %s1682 = sshll.u32 %s1678, 4
          %s1683 = int_to_ptr.hbm [resolvable:$true] %s1682
          %1685 = dma.vmem_to_hbm [thread:$0]  %s1681, 128, %s1683, %s1667
        $region48: #{tpu_custom_call.1} parent=31 // pred_fallthru
          _
      $region32: #{tpu_custom_call.1} parent=5 // pred_fallthru
        _
      %p1686 = scmp.le.s32.totalorder 2, %s17
      // Predicated region
      $region49: #{tpu_custom_call.1} parent=5 // pred_check
        %p1687 = pneg %p1686
      $region50: #{tpu_custom_call.1} parent=5 // pred_check_branch
        %1689 = sbr.rel (%p1687) target = $region52
      $region51: #{tpu_custom_call.1} parent=5 // pred_region
        %s1690 = ssub.s32 %s17, 2
        // Predicated region
        $region53: #{tpu_custom_call.1} parent=51 // pred_check
          %p1691 = pneg %p114
        $region54: #{tpu_custom_call.1} parent=51 // pred_check_branch
          %1693 = sbr.rel (%p1691) target = $region56
        $region55: #{tpu_custom_call.1} parent=51 // pred_region
          %s1694 = sand.u32 %s99, 1
          %s1695 = scalar_lea.sflag [#allocation6], %s1694
          %s1696 = sand.u32 %s99, 1
          %s1697 = smul.addr %s1696, 8
          %s1698 = scalar_lea.vmem [#allocation11], %s1697
          %1700 = dma.done %s1695, 128
        $region56: #{tpu_custom_call.1} parent=51 // pred_fallthru
          _
      $region52: #{tpu_custom_call.1} parent=5 // pred_fallthru
        _
    $region6: #{tpu_custom_call.1} parent=1 // loop_footer
      %s21 = sadd.s32 1, %s17
    $region7: #{tpu_custom_call.1} parent=1 // loop_footer_branch
      %16 = sbr.rel target = $region3
    $region8: #{tpu_custom_call.1} parent=1 // loop_exit
      _
    %1701 = vsyncpa [#allocation5], 1
    %s1702 = scalar_lea.sflag [#allocation5], 1
    %1703 = vsyncpa %s1702, 1
    %1704 = vsyncpa [#allocation6], 1
    %s1705 = scalar_lea.sflag [#allocation6], 1
    %1706 = vsyncpa %s1705, 1
    %1707 = vsyncpa [#allocation7], 1
    %s1708 = scalar_lea.sflag [#allocation7], 1
    %1709 = vsyncpa %s1708, 1
    %1710 = vsyncpa [#allocation9], 1

</llo_original>
